<compile_context>
chip_gen: v6e
topology: v6e:2x2x1
jax: 0.10.0
libtpu: 0.0.40
codegen_flags: <defaults>
</compile_context>

<pallas_src>
import jax
import jax.numpy as jnp
from jax.experimental import pallas as pl
from jax.experimental.pallas import tpu as pltpu


def lstm_critic_kernel(x_ref, vec_ref, lens_ref, w_ix_ref, w_iv_ref, w_hh0_ref,
                       w_l1_ref, b0_ref, b1_ref, w_fc_ref, b_fc_ref,
                       o_ref, g0_scr, h01_scr):
    # x_ref:    (T, TB, IN)  time-major batch tile, MXU dtype (bf16)
    # vec_ref:  (TB, E)      MXU dtype
    # lens_ref: (TB, 1)      int32
    # w_ix_ref: (IN, 4H)     layer-0 input weight (x part),   pre-transposed, MXU dtype
    # w_iv_ref: (E, 4H)      layer-0 input weight (vec part), pre-transposed, MXU dtype
    # w_hh0_ref:(H, 4H)      layer-0 recurrent weight,        pre-transposed, MXU dtype
    # w_l1_ref: (2H, 4H)     fused [w_ih1; w_hh1],            pre-transposed, MXU dtype
    # b0_ref:   (1, 4H)      b_ih0 + b_hh0, f32
    # b1_ref:   (1, 4H)      b_ih1 + b_hh1, f32
    # w_fc_ref: (1, H), b_fc_ref: (1, 1)  f32
    # o_ref:    (TB, 1)      f32
    # g0_scr:   VMEM (T, TB, 4H)  MXU dtype   (precomputed layer-0 gate pre-activations)
    # h01_scr:  VMEM (TB, 2H)     f32         (persistent packed [h0 | h1] state)
    T, TB, IN = x_ref.shape
    H = w_hh0_ref.shape[0]
    H4 = 4 * H
    mxu_dt = x_ref.dtype

    # ---------------- Prologue (overlaps with the pipeline, off the recurrent chain) --------
    # Time-invariant `vector` contribution + fused layer-0 bias.
    g0_vec = (jnp.dot(vec_ref[...], w_iv_ref[...],
                      preferred_element_type=jnp.float32) + b0_ref[...])        # (TB, 4H) f32

    # Layer-0 input projection for ALL timesteps in ONE matmul.  TB % 8 == 0, so this flatten
    # collapses whole (8,128) tiles (relayout-free).
    x_flat = x_ref[...].reshape(T * TB, IN)
    g0_x = jnp.dot(x_flat, w_ix_ref[...], preferred_element_type=jnp.float32)   # (T*TB, 4H)
    # Fold vector + bias into the scratch at fill time so the loop body only adds recurrence.
    g0_scr[...] = (g0_x.reshape(T, TB, H4) + g0_vec[None]).astype(g0_scr.dtype)

    # Persistent packed hidden state [h0 | h1]: layer-1 gets a single fused (TB,2H)@(2H,4H)
    # MXU push per step with no per-step concat.
    h01_scr[...] = jnp.zeros_like(h01_scr)

    w_hh0 = w_hh0_ref[...]
    w_l1 = w_l1_ref[...]
    b1 = b1_ref[...]
    lens = lens_ref[...]                                                        # (TB, 1) int32

    def gates_to_hc(gates, c_prev):
        # One sigmoid + one tanh over the full (TB, 4H) tile, then slice (PyTorch gate order
        # i, f, g, o).  3 EUP pushes per layer instead of 5; element-wise math stays f32.
        sig = jax.nn.sigmoid(gates)
        th = jnp.tanh(gates)
        c = sig[:, H:2 * H] * c_prev + sig[:, 0:H] * th[:, 2 * H:3 * H]
        h = sig[:, 3 * H:4 * H] * jnp.tanh(c)
        return h, c

    def step(t, carry):
        c0, c1, out_sel = carry
        # Layer 0: precomputed input gates + recurrent matmul on h0_{t-1}.
        g0 = g0_scr[t] + jnp.dot(h01_scr[:, 0:H].astype(mxu_dt), w_hh0,
                                 preferred_element_type=jnp.float32)
        h0, c0 = gates_to_hc(g0, c0)
        h01_scr[:, 0:H] = h0                     # h1 half still holds h1_{t-1}
        # Layer 1: single fused matmul over [h0_t | h1_{t-1}]  (K = 2H).
        g1 = jnp.dot(h01_scr[...].astype(mxu_dt), w_l1,
                     preferred_element_type=jnp.float32) + b1
        h1, c1 = gates_to_hc(g1, c1)
        h01_scr[:, H:2 * H] = h1
        # Masked select replaces the per-example gather output[i, lens[i]-1].
        out_sel = jnp.where(lens == (t + 1), h1, out_sel)
        return c0, c1, out_sel

    zeros = jnp.zeros((TB, H), jnp.float32)
    # Fully unrolled fixed-T loop: gives the LLO scheduler visibility to overlap the g0 loads,
    # MXU pushes and EUP sigmoid/tanh across consecutive timesteps of the serial chain.
    _, _, out_sel = jax.lax.fori_loop(0, T, step, (zeros, zeros, zeros), unroll=True)

    # Final fully-connected layer (output_size = 1): VPU multiply + lane reduction.
    o_ref[...] = jnp.sum(out_sel * w_fc_ref[...], axis=-1, keepdims=True) + b_fc_ref[...]


def lstm_critic_forward(x, lens, vector, params, *, tile_b=None, mxu_dtype=jnp.bfloat16):
    B, T, IN = x.shape
    E = vector.shape[1]
    H = params["w_hh0"].shape[1]
    H4 = 4 * H

    # ---- Batch tile: as large as VMEM allows, multiple of 8, and >= 2 grid steps so both
    # ---- v7x TensorCores get work. No silent fallback to a single grid step.
    if tile_b is None:
        cands = [d for d in range(1, B + 1)
                 if B % d == 0 and d <= 256 and (B // d >= 2 or B == 1)]
        tile_b = max(cands) if cands else B
    assert B % tile_b == 0, "batch must be divisible by tile_b (pad the batch host-side)"
    assert tile_b % 8 == 0 or tile_b == B, "tile_b should be a multiple of 8"
    grid = (B // tile_b,)

    # ---- Pack / pre-transpose parameters into a few dense blocks (one DMA stream each) ----
    w_ih0 = params["w_ih0"]                                         # (4H, IN+E)
    w_ix = jnp.transpose(w_ih0[:, :IN]).astype(mxu_dtype)           # (IN, 4H)
    w_iv = jnp.transpose(w_ih0[:, IN:]).astype(mxu_dtype)           # (E,  4H)
    w_hh0 = jnp.transpose(params["w_hh0"]).astype(mxu_dtype)        # (H,  4H)
    w_l1 = jnp.concatenate([jnp.transpose(params["w_ih1"]),
                            jnp.transpose(params["w_hh1"])],
                           axis=0).astype(mxu_dtype)                # (2H, 4H) fused layer-1
    b0 = (params["b_ih0"] + params["b_hh0"]).reshape(1, H4).astype(jnp.float32)
    b1 = (params["b_ih1"] + params["b_hh1"]).reshape(1, H4).astype(jnp.float32)
    w_fc = params["w_fc"].reshape(1, H).astype(jnp.float32)         # row vector (VPU reduce)
    b_fc = params["b_fc"].reshape(1, 1).astype(jnp.float32)

    x_tm = jnp.transpose(x, (1, 0, 2)).astype(mxu_dtype)            # time-major (T, B, IN)
    vec = vector.astype(mxu_dtype)
    # Clamp lens into [1, T]; PyTorch would index output[i, lens-1] directly (and wrap at 0).
    lens2 = jnp.clip(lens.astype(jnp.int32), 1, T).reshape(B, 1)

    def full_spec(p):
        nd = p.ndim
        return pl.BlockSpec(p.shape, lambda b, _nd=nd: (0,) * _nd)

    in_specs = [
        pl.BlockSpec((T, tile_b, IN), lambda b: (0, b, 0)),   # x, time-major batch tile
        pl.BlockSpec((tile_b, E), lambda b: (b, 0)),          # vector
        pl.BlockSpec((tile_b, 1), lambda b: (b, 0)),          # lens
        full_spec(w_ix), full_spec(w_iv), full_spec(w_hh0), full_spec(w_l1),
        full_spec(b0), full_spec(b1), full_spec(w_fc), full_spec(b_fc),
    ]
    out_specs = pl.BlockSpec((tile_b, 1), lambda b: (b, 0))

    # ---- Explicit VMEM budget (v5e scoped default is only 16 MiB; v7x physical is 64 MiB) --
    it = jnp.dtype(mxu_dtype).itemsize
    est_vmem = (2 * T * tile_b * IN * it                     # double-buffered x tile
                + 2 * tile_b * (E * it + 4) + 2 * tile_b * 4  # vector / lens / output tiles
                + T * tile_b * H4 * it                        # g0 gate scratch
                + tile_b * 2 * H * 4                          # packed hidden-state scratch
                + (IN + E + 3 * H) * H4 * it + 2 * H4 * 4 + H * 4 + 4)  # weights + biases
    vmem_limit = int(min(max(2 * est_vmem, 16 * 1024 * 1024), 56 * 1024 * 1024))

    return pl.pallas_call(
        lstm_critic_kernel,
        out_shape=jax.ShapeDtypeStruct((B, 1), jnp.float32),
        grid=grid,
        in_specs=in_specs,
        out_specs=out_specs,
        scratch_shapes=[pltpu.VMEM((T, tile_b, H4), mxu_dtype),   # precomputed layer-0 gates
                        pltpu.VMEM((tile_b, 2 * H), jnp.float32)],  # packed [h0 | h1]
        compiler_params=pltpu.CompilerParams(
            dimension_semantics=("parallel",),
            vmem_limit_bytes=vmem_limit),
    )(x_tm, vec, lens2, w_ix, w_iv, w_hh0, w_l1, b0, b1, w_fc, b_fc)


def init_params(key, in_size, embed, hidden, out_size):
    # PyTorch-layout parameters: weight_ih_l0 (4H, in+embed), weight_hh (4H, H), biases (4H,)
    ks = jax.random.split(key, 10)
    s = 0.2
    H4 = 4 * hidden
    return {
        "w_ih0": jax.random.normal(ks[0], (H4, in_size + embed), jnp.float32) * s,
        "w_hh0": jax.random.normal(ks[1], (H4, hidden), jnp.float32) * s,
        "b_ih0": jax.random.normal(ks[2], (H4,), jnp.float32) * s,
        "b_hh0": jax.random.normal(ks[3], (H4,), jnp.float32) * s,
        "w_ih1": jax.random.normal(ks[4], (H4, hidden), jnp.float32) * s,
        "w_hh1": jax.random.normal(ks[5], (H4, hidden), jnp.float32) * s,
        "b_ih1": jax.random.normal(ks[6], (H4,), jnp.float32) * s,
        "b_hh1": jax.random.normal(ks[7], (H4,), jnp.float32) * s,
        "w_fc": jax.random.normal(ks[8], (out_size, hidden), jnp.float32) * s,
        "b_fc": jax.random.normal(ks[9], (out_size,), jnp.float32) * s,
    }


def reference_forward(x, lens, vector, p):
    # Pure-JAX (f32) mirror of the PyTorch module in eval mode.
    B, T, _ = x.shape
    xcat = jnp.concatenate([x, jnp.repeat(vector[:, None, :], T, axis=1)], axis=2)

    def lstm_layer(inp, w_ih, w_hh, b_ih, b_hh):
        Hh = w_hh.shape[1]

        def step(carry, x_t):
            h, c = carry
            gates = x_t @ w_ih.T + b_ih + h @ w_hh.T + b_hh
            i, f, g, o = jnp.split(gates, 4, axis=-1)
            i = jax.nn.sigmoid(i)
            f = jax.nn.sigmoid(f)
            g = jnp.tanh(g)
            o = jax.nn.sigmoid(o)
            c = f * c + i * g
            h = o * jnp.tanh(c)
            return (h, c), h

        init = (jnp.zeros((B, Hh), jnp.float32), jnp.zeros((B, Hh), jnp.float32))
        _, hs = jax.lax.scan(step, init, jnp.swapaxes(inp, 0, 1))
        return jnp.swapaxes(hs, 0, 1)  # (B, T, H)

    out0 = lstm_layer(xcat, p["w_ih0"], p["w_hh0"], p["b_ih0"], p["b_hh0"])
    out1 = lstm_layer(out0, p["w_ih1"], p["w_hh1"], p["b_ih1"], p["b_hh1"])
    sel = out1[jnp.arange(B), lens - 1]               # output[i, lens[i]-1, :]
    return sel @ p["w_fc"].T + p["b_fc"]


if __name__ == "__main__":
    key = jax.random.PRNGKey(0)
    kp, kx, kv, kl = jax.random.split(key, 4)

    # Small shapes consistent with the module (input + embed -> 2-layer LSTM hidden -> 1).
    B, T = 16, 8
    IN_SIZE, EMBED, HIDDEN, OUT = 8, 24, 32, 1

    params = init_params(kp, IN_SIZE, EMBED, HIDDEN, OUT)
    x = jax.random.normal(kx, (B, T, IN_SIZE), jnp.float32)
    vector = jax.random.normal(kv, (B, EMBED), jnp.float32)
    lens = jax.random.randint(kl, (B,), 1, T + 1)     # valid lengths in [1, T]

    out = lstm_critic_forward(x, lens, vector, params, tile_b=8)   # grid of 2 (both v7x TCs)
    out = jax.block_until_ready(out)

    ref = reference_forward(x, lens, vector, params)
    assert out.shape == (B, OUT)
    # bf16 MXU operands (f32 accumulation) -> looser tolerance than the pure-f32 reference.
    err = float(jnp.max(jnp.abs(out - ref)))
    assert err < 5e-2, f"mismatch vs JAX reference: max|diff|={err}"

    print("KERNEL_OK")
</pallas_src>

<mosaic_0001>
module attributes {stable_mosaic.version = 11 : i64} {
  func.func @lstm_critic_kernel(%arg0: i32, %arg1: memref<8x8x8xbf16, #tpu.memory_space<vmem>>, %arg2: memref<8x24xbf16, #tpu.memory_space<vmem>>, %arg3: memref<8x1xi32, #tpu.memory_space<vmem>>, %arg4: memref<8x128xbf16, #tpu.memory_space<vmem>>, %arg5: memref<24x128xbf16, #tpu.memory_space<vmem>>, %arg6: memref<32x128xbf16, #tpu.memory_space<vmem>>, %arg7: memref<64x128xbf16, #tpu.memory_space<vmem>>, %arg8: memref<1x128xf32, #tpu.memory_space<vmem>>, %arg9: memref<1x128xf32, #tpu.memory_space<vmem>>, %arg10: memref<1x32xf32, #tpu.memory_space<vmem>>, %arg11: memref<1x1xf32, #tpu.memory_space<vmem>>, %arg12: memref<8x1xf32, #tpu.memory_space<vmem>>, %arg13: memref<8x8x128xbf16, #tpu.memory_space<vmem>>, %arg14: memref<8x64xf32, #tpu.memory_space<vmem>>) attributes {dimension_semantics = [#tpu.dimension_semantics<parallel>], iteration_bounds = array<i64: 2>, scalar_prefetch = 0 : i64, scratch_operands = 2 : i64, tpu.core_type = #tpu.core_type<tc>, window_params = [{transform_indices = @transform_0, window_bounds = array<i64: 8, 8, 8>}, {transform_indices = @transform_1, window_bounds = array<i64: 8, 24>}, {transform_indices = @transform_2, window_bounds = array<i64: 8, 1>}, {pipeline_mode = #tpu.pipeline_mode<synchronous>, transform_indices = @transform_3, window_bounds = array<i64: 8, 128>}, {pipeline_mode = #tpu.pipeline_mode<synchronous>, transform_indices = @transform_4, window_bounds = array<i64: 24, 128>}, {pipeline_mode = #tpu.pipeline_mode<synchronous>, transform_indices = @transform_5, window_bounds = array<i64: 32, 128>}, {pipeline_mode = #tpu.pipeline_mode<synchronous>, transform_indices = @transform_6, window_bounds = array<i64: 64, 128>}, {pipeline_mode = #tpu.pipeline_mode<synchronous>, transform_indices = @transform_7, window_bounds = array<i64: 1, 128>}, {pipeline_mode = #tpu.pipeline_mode<synchronous>, transform_indices = @transform_8, window_bounds = array<i64: 1, 128>}, {pipeline_mode = #tpu.pipeline_mode<synchronous>, transform_indices = @transform_9, window_bounds = array<i64: 1, 32>}, {pipeline_mode = #tpu.pipeline_mode<synchronous>, transform_indices = @transform_10, window_bounds = array<i64: 1, 1>}, {transform_indices = @transform_11, window_bounds = array<i64: 8, 1>}]} {
    %c0 = arith.constant 0 : index
    %c0_0 = arith.constant 0 : index
    %0 = vector.load %arg2[%c0, %c0_0] : memref<8x24xbf16, #tpu.memory_space<vmem>>, vector<8x24xbf16>
    %c0_1 = arith.constant 0 : index
    %c0_2 = arith.constant 0 : index
    %1 = vector.load %arg5[%c0_1, %c0_2] : memref<24x128xbf16, #tpu.memory_space<vmem>>, vector<24x128xbf16>
    %cst = arith.constant dense<0.000000e+00> : vector<8x128xf32>
    %2 = tpu.matmul %0, %1, %cst {dimension_numbers = #tpu.dot_dimension_numbers<[1], [0], [0], [1], [0, 0, 1, 1], [], []>} : vector<8x24xbf16>, vector<24x128xbf16>, vector<8x128xf32> -> vector<8x128xf32>
    %c0_3 = arith.constant 0 : index
    %c0_4 = arith.constant 0 : index
    %3 = vector.load %arg8[%c0_3, %c0_4] : memref<1x128xf32, #tpu.memory_space<vmem>>, vector<1x128xf32>
    %4 = vector.broadcast %3 : vector<1x128xf32> to vector<8x128xf32>
    %5 = arith.addf %2, %4 : vector<8x128xf32>
    %c0_5 = arith.constant 0 : index
    %c0_6 = arith.constant 0 : index
    %c0_7 = arith.constant 0 : index
    %6 = vector.load %arg1[%c0_5, %c0_6, %c0_7] : memref<8x8x8xbf16, #tpu.memory_space<vmem>>, vector<8x8x8xbf16>
    %7 = vector.shape_cast %6 : vector<8x8x8xbf16> to vector<64x8xbf16>
    %c0_8 = arith.constant 0 : index
    %c0_9 = arith.constant 0 : index
    %8 = vector.load %arg4[%c0_8, %c0_9] : memref<8x128xbf16, #tpu.memory_space<vmem>>, vector<8x128xbf16>
    %cst_10 = arith.constant dense<0.000000e+00> : vector<64x128xf32>
    %9 = tpu.matmul %7, %8, %cst_10 {dimension_numbers = #tpu.dot_dimension_numbers<[1], [0], [0], [1], [0, 0, 1, 1], [], []>} : vector<64x8xbf16>, vector<8x128xbf16>, vector<64x128xf32> -> vector<64x128xf32>
    %10 = vector.shape_cast %9 : vector<64x128xf32> to vector<8x8x128xf32>
    %11 = vector.shape_cast %5 : vector<8x128xf32> to vector<1x8x128xf32>
    %12 = vector.broadcast %11 : vector<1x8x128xf32> to vector<8x8x128xf32>
    %13 = arith.addf %10, %12 : vector<8x8x128xf32>
    %14 = arith.truncf %13 : vector<8x8x128xf32> to vector<8x8x128xbf16>
    %c0_11 = arith.constant 0 : index
    %c0_12 = arith.constant 0 : index
    %c0_13 = arith.constant 0 : index
    %15 = vector.load %arg13[%c0_11, %c0_12, %c0_13] : memref<8x8x128xbf16, #tpu.memory_space<vmem>>, vector<8x8x128xbf16>
    tpu.vector_store %arg13[%c0_11, %c0_12, %c0_13], %14 {strides = array<i32>} : memref<8x8x128xbf16, #tpu.memory_space<vmem>>, vector<8x8x128xbf16>,
    %cst_14 = arith.constant 0.000000e+00 : f32
    %16 = vector.broadcast %cst_14 : f32 to vector<8x64xf32>
    %c0_15 = arith.constant 0 : index
    %c0_16 = arith.constant 0 : index
    %17 = vector.load %arg14[%c0_15, %c0_16] : memref<8x64xf32, #tpu.memory_space<vmem>>, vector<8x64xf32>
    tpu.vector_store %arg14[%c0_15, %c0_16], %16 {strides = array<i32>} : memref<8x64xf32, #tpu.memory_space<vmem>>, vector<8x64xf32>,
    %c0_17 = arith.constant 0 : index
    %c0_18 = arith.constant 0 : index
    %18 = vector.load %arg6[%c0_17, %c0_18] : memref<32x128xbf16, #tpu.memory_space<vmem>>, vector<32x128xbf16>
    %c0_19 = arith.constant 0 : index
    %c0_20 = arith.constant 0 : index
    %19 = vector.load %arg7[%c0_19, %c0_20] : memref<64x128xbf16, #tpu.memory_space<vmem>>, vector<64x128xbf16>
    %c0_21 = arith.constant 0 : index
    %c0_22 = arith.constant 0 : index
    %20 = vector.load %arg9[%c0_21, %c0_22] : memref<1x128xf32, #tpu.memory_space<vmem>>, vector<1x128xf32>
    %c0_23 = arith.constant 0 : index
    %c0_24 = arith.constant 0 : index
    %21 = vector.load %arg3[%c0_23, %c0_24] : memref<8x1xi32, #tpu.memory_space<vmem>>, vector<8x1xi32>
    %cst_25 = arith.constant 0.000000e+00 : f32
    %22 = vector.broadcast %cst_25 : f32 to vector<8x32xf32>
    %c0_i32 = arith.constant 0 : i32
    %23 = arith.index_cast %c0_i32 : i32 to index
    %c0_26 = arith.constant 0 : index
    %c0_27 = arith.constant 0 : index
    %24 = vector.load %arg13[%23, %c0_26, %c0_27] : memref<8x8x128xbf16, #tpu.memory_space<vmem>>, vector<1x8x128xbf16>
    %25 = vector.shape_cast %24 : vector<1x8x128xbf16> to vector<8x128xbf16>
    %c0_28 = arith.constant 0 : index
    %c0_29 = arith.constant 0 : index
    %26 = vector.load %arg14[%c0_28, %c0_29] : memref<8x64xf32, #tpu.memory_space<vmem>>, vector<8x32xf32>
    %27 = arith.truncf %26 : vector<8x32xf32> to vector<8x32xbf16>
    %cst_30 = arith.constant dense<0.000000e+00> : vector<8x128xf32>
    %28 = tpu.matmul %27, %18, %cst_30 {dimension_numbers = #tpu.dot_dimension_numbers<[1], [0], [0], [1], [0, 0, 1, 1], [], []>} : vector<8x32xbf16>, vector<32x128xbf16>, vector<8x128xf32> -> vector<8x128xf32>
    %29 = arith.extf %25 : vector<8x128xbf16> to vector<8x128xf32>
    %30 = arith.addf %29, %28 : vector<8x128xf32>
    %31 = arith.negf %30 : vector<8x128xf32>
    %32 = math.exp %31 : vector<8x128xf32>
    %cst_31 = arith.constant 1.000000e+00 : f32
    %33 = vector.broadcast %cst_31 : f32 to vector<8x128xf32>
    %34 = arith.addf %33, %32 : vector<8x128xf32>
    %35 = arith.divf %33, %34 : vector<8x128xf32>
    %36 = math.tanh %30 : vector<8x128xf32>
    %37 = vector.extract_strided_slice %35 {offsets = [0, 32], sizes = [8, 32], strides = [1, 1]} : vector<8x128xf32> to vector<8x32xf32>
    %38 = arith.mulf %37, %22 : vector<8x32xf32>
    %39 = vector.extract_strided_slice %35 {offsets = [0, 0], sizes = [8, 32], strides = [1, 1]} : vector<8x128xf32> to vector<8x32xf32>
    %40 = vector.extract_strided_slice %36 {offsets = [0, 64], sizes = [8, 32], strides = [1, 1]} : vector<8x128xf32> to vector<8x32xf32>
    %41 = arith.mulf %39, %40 : vector<8x32xf32>
    %42 = arith.addf %38, %41 : vector<8x32xf32>
    %43 = vector.extract_strided_slice %35 {offsets = [0, 96], sizes = [8, 32], strides = [1, 1]} : vector<8x128xf32> to vector<8x32xf32>
    %44 = math.tanh %42 : vector<8x32xf32>
    %45 = arith.mulf %43, %44 : vector<8x32xf32>
    %c0_32 = arith.constant 0 : index
    %c0_33 = arith.constant 0 : index
    %46 = vector.load %arg14[%c0_32, %c0_33] : memref<8x64xf32, #tpu.memory_space<vmem>>, vector<8x32xf32>
    tpu.vector_store %arg14[%c0_32, %c0_33], %45 {strides = array<i32>} : memref<8x64xf32, #tpu.memory_space<vmem>>, vector<8x32xf32>,
    %c0_34 = arith.constant 0 : index
    %c0_35 = arith.constant 0 : index
    %47 = vector.load %arg14[%c0_34, %c0_35] : memref<8x64xf32, #tpu.memory_space<vmem>>, vector<8x64xf32>
    %48 = arith.truncf %47 : vector<8x64xf32> to vector<8x64xbf16>
    %cst_36 = arith.constant dense<0.000000e+00> : vector<8x128xf32>
    %49 = tpu.matmul %48, %19, %cst_36 {dimension_numbers = #tpu.dot_dimension_numbers<[1], [0], [0], [1], [0, 0, 1, 1], [], []>} : vector<8x64xbf16>, vector<64x128xbf16>, vector<8x128xf32> -> vector<8x128xf32>
    %50 = vector.broadcast %20 : vector<1x128xf32> to vector<8x128xf32>
    %51 = arith.addf %49, %50 : vector<8x128xf32>
    %52 = arith.negf %51 : vector<8x128xf32>
    %53 = math.exp %52 : vector<8x128xf32>
    %cst_37 = arith.constant 1.000000e+00 : f32
    %54 = vector.broadcast %cst_37 : f32 to vector<8x128xf32>
    %55 = arith.addf %54, %53 : vector<8x128xf32>
    %56 = arith.divf %54, %55 : vector<8x128xf32>
    %57 = math.tanh %51 : vector<8x128xf32>
    %58 = vector.extract_strided_slice %56 {offsets = [0, 32], sizes = [8, 32], strides = [1, 1]} : vector<8x128xf32> to vector<8x32xf32>
    %59 = arith.mulf %58, %22 : vector<8x32xf32>
    %60 = vector.extract_strided_slice %56 {offsets = [0, 0], sizes = [8, 32], strides = [1, 1]} : vector<8x128xf32> to vector<8x32xf32>
    %61 = vector.extract_strided_slice %57 {offsets = [0, 64], sizes = [8, 32], strides = [1, 1]} : vector<8x128xf32> to vector<8x32xf32>
    %62 = arith.mulf %60, %61 : vector<8x32xf32>
    %63 = arith.addf %59, %62 : vector<8x32xf32>
    %64 = vector.extract_strided_slice %56 {offsets = [0, 96], sizes = [8, 32], strides = [1, 1]} : vector<8x128xf32> to vector<8x32xf32>
    %65 = math.tanh %63 : vector<8x32xf32>
    %66 = arith.mulf %64, %65 : vector<8x32xf32>
    %c0_38 = arith.constant 0 : index
    %c32 = arith.constant 32 : index
    %67 = vector.load %arg14[%c0_38, %c32] : memref<8x64xf32, #tpu.memory_space<vmem>>, vector<8x32xf32>
    tpu.vector_store %arg14[%c0_38, %c32], %66 {strides = array<i32>} : memref<8x64xf32, #tpu.memory_space<vmem>>, vector<8x32xf32>,
    %c1_i32 = arith.constant 1 : i32
    %68 = arith.addi %c0_i32, %c1_i32 : i32
    %69 = vector.broadcast %68 : i32 to vector<8x1xi32>
    %70 = arith.cmpi eq, %21, %69 : vector<8x1xi32>
    %71 = vector.shape_cast %70 : vector<8x1xi1> to vector<8x1xi1>
    %72 = vector.broadcast %71 : vector<8x1xi1> to vector<8x32xi1>
    %73 = arith.select %72, %66, %22 : vector<8x32xi1>, vector<8x32xf32>
    %c1_i32_39 = arith.constant 1 : i32
    %74 = arith.index_cast %c1_i32_39 : i32 to index
    %c0_40 = arith.constant 0 : index
    %c0_41 = arith.constant 0 : index
    %75 = vector.load %arg13[%74, %c0_40, %c0_41] : memref<8x8x128xbf16, #tpu.memory_space<vmem>>, vector<1x8x128xbf16>
    %76 = vector.shape_cast %75 : vector<1x8x128xbf16> to vector<8x128xbf16>
    %c0_42 = arith.constant 0 : index
    %c0_43 = arith.constant 0 : index
    %77 = vector.load %arg14[%c0_42, %c0_43] : memref<8x64xf32, #tpu.memory_space<vmem>>, vector<8x32xf32>
    %78 = arith.truncf %77 : vector<8x32xf32> to vector<8x32xbf16>
    %cst_44 = arith.constant dense<0.000000e+00> : vector<8x128xf32>
    %79 = tpu.matmul %78, %18, %cst_44 {dimension_numbers = #tpu.dot_dimension_numbers<[1], [0], [0], [1], [0, 0, 1, 1], [], []>} : vector<8x32xbf16>, vector<32x128xbf16>, vector<8x128xf32> -> vector<8x128xf32>
    %80 = arith.extf %76 : vector<8x128xbf16> to vector<8x128xf32>
    %81 = arith.addf %80, %79 : vector<8x128xf32>
    %82 = arith.negf %81 : vector<8x128xf32>
    %83 = math.exp %82 : vector<8x128xf32>
    %cst_45 = arith.constant 1.000000e+00 : f32
    %84 = vector.broadcast %cst_45 : f32 to vector<8x128xf32>
    %85 = arith.addf %84, %83 : vector<8x128xf32>
    %86 = arith.divf %84, %85 : vector<8x128xf32>
    %87 = math.tanh %81 : vector<8x128xf32>
    %88 = vector.extract_strided_slice %86 {offsets = [0, 32], sizes = [8, 32], strides = [1, 1]} : vector<8x128xf32> to vector<8x32xf32>
    %89 = arith.mulf %88, %42 : vector<8x32xf32>
    %90 = vector.extract_strided_slice %86 {offsets = [0, 0], sizes = [8, 32], strides = [1, 1]} : vector<8x128xf32> to vector<8x32xf32>
    %91 = vector.extract_strided_slice %87 {offsets = [0, 64], sizes = [8, 32], strides = [1, 1]} : vector<8x128xf32> to vector<8x32xf32>
    %92 = arith.mulf %90, %91 : vector<8x32xf32>
    %93 = arith.addf %89, %92 : vector<8x32xf32>
    %94 = vector.extract_strided_slice %86 {offsets = [0, 96], sizes = [8, 32], strides = [1, 1]} : vector<8x128xf32> to vector<8x32xf32>
    %95 = math.tanh %93 : vector<8x32xf32>
    %96 = arith.mulf %94, %95 : vector<8x32xf32>
    %c0_46 = arith.constant 0 : index
    %c0_47 = arith.constant 0 : index
    %97 = vector.load %arg14[%c0_46, %c0_47] : memref<8x64xf32, #tpu.memory_space<vmem>>, vector<8x32xf32>
    tpu.vector_store %arg14[%c0_46, %c0_47], %96 {strides = array<i32>} : memref<8x64xf32, #tpu.memory_space<vmem>>, vector<8x32xf32>,
    %c0_48 = arith.constant 0 : index
    %c0_49 = arith.constant 0 : index
    %98 = vector.load %arg14[%c0_48, %c0_49] : memref<8x64xf32, #tpu.memory_space<vmem>>, vector<8x64xf32>
    %99 = arith.truncf %98 : vector<8x64xf32> to vector<8x64xbf16>
    %cst_50 = arith.constant dense<0.000000e+00> : vector<8x128xf32>
    %100 = tpu.matmul %99, %19, %cst_50 {dimension_numbers = #tpu.dot_dimension_numbers<[1], [0], [0], [1], [0, 0, 1, 1], [], []>} : vector<8x64xbf16>, vector<64x128xbf16>, vector<8x128xf32> -> vector<8x128xf32>
    %101 = vector.broadcast %20 : vector<1x128xf32> to vector<8x128xf32>
    %102 = arith.addf %100, %101 : vector<8x128xf32>
    %103 = arith.negf %102 : vector<8x128xf32>
    %104 = math.exp %103 : vector<8x128xf32>
    %cst_51 = arith.constant 1.000000e+00 : f32
    %105 = vector.broadcast %cst_51 : f32 to vector<8x128xf32>
    %106 = arith.addf %105, %104 : vector<8x128xf32>
    %107 = arith.divf %105, %106 : vector<8x128xf32>
    %108 = math.tanh %102 : vector<8x128xf32>
    %109 = vector.extract_strided_slice %107 {offsets = [0, 32], sizes = [8, 32], strides = [1, 1]} : vector<8x128xf32> to vector<8x32xf32>
    %110 = arith.mulf %109, %63 : vector<8x32xf32>
    %111 = vector.extract_strided_slice %107 {offsets = [0, 0], sizes = [8, 32], strides = [1, 1]} : vector<8x128xf32> to vector<8x32xf32>
    %112 = vector.extract_strided_slice %108 {offsets = [0, 64], sizes = [8, 32], strides = [1, 1]} : vector<8x128xf32> to vector<8x32xf32>
    %113 = arith.mulf %111, %112 : vector<8x32xf32>
    %114 = arith.addf %110, %113 : vector<8x32xf32>
    %115 = vector.extract_strided_slice %107 {offsets = [0, 96], sizes = [8, 32], strides = [1, 1]} : vector<8x128xf32> to vector<8x32xf32>
    %116 = math.tanh %114 : vector<8x32xf32>
    %117 = arith.mulf %115, %116 : vector<8x32xf32>
    %c0_52 = arith.constant 0 : index
    %c32_53 = arith.constant 32 : index
    %118 = vector.load %arg14[%c0_52, %c32_53] : memref<8x64xf32, #tpu.memory_space<vmem>>, vector<8x32xf32>
    tpu.vector_store %arg14[%c0_52, %c32_53], %117 {strides = array<i32>} : memref<8x64xf32, #tpu.memory_space<vmem>>, vector<8x32xf32>,
    %c1_i32_54 = arith.constant 1 : i32
    %119 = arith.addi %c1_i32_39, %c1_i32_54 : i32
    %120 = vector.broadcast %119 : i32 to vector<8x1xi32>
    %121 = arith.cmpi eq, %21, %120 : vector<8x1xi32>
    %122 = vector.shape_cast %121 : vector<8x1xi1> to vector<8x1xi1>
    %123 = vector.broadcast %122 : vector<8x1xi1> to vector<8x32xi1>
    %124 = arith.select %123, %117, %73 : vector<8x32xi1>, vector<8x32xf32>
    %c2_i32 = arith.constant 2 : i32
    %125 = arith.index_cast %c2_i32 : i32 to index
    %c0_55 = arith.constant 0 : index
    %c0_56 = arith.constant 0 : index
    %126 = vector.load %arg13[%125, %c0_55, %c0_56] : memref<8x8x128xbf16, #tpu.memory_space<vmem>>, vector<1x8x128xbf16>
    %127 = vector.shape_cast %126 : vector<1x8x128xbf16> to vector<8x128xbf16>
    %c0_57 = arith.constant 0 : index
    %c0_58 = arith.constant 0 : index
    %128 = vector.load %arg14[%c0_57, %c0_58] : memref<8x64xf32, #tpu.memory_space<vmem>>, vector<8x32xf32>
    %129 = arith.truncf %128 : vector<8x32xf32> to vector<8x32xbf16>
    %cst_59 = arith.constant dense<0.000000e+00> : vector<8x128xf32>
    %130 = tpu.matmul %129, %18, %cst_59 {dimension_numbers = #tpu.dot_dimension_numbers<[1], [0], [0], [1], [0, 0, 1, 1], [], []>} : vector<8x32xbf16>, vector<32x128xbf16>, vector<8x128xf32> -> vector<8x128xf32>
    %131 = arith.extf %127 : vector<8x128xbf16> to vector<8x128xf32>
    %132 = arith.addf %131, %130 : vector<8x128xf32>
    %133 = arith.negf %132 : vector<8x128xf32>
    %134 = math.exp %133 : vector<8x128xf32>
    %cst_60 = arith.constant 1.000000e+00 : f32
    %135 = vector.broadcast %cst_60 : f32 to vector<8x128xf32>
    %136 = arith.addf %135, %134 : vector<8x128xf32>
    %137 = arith.divf %135, %136 : vector<8x128xf32>
    %138 = math.tanh %132 : vector<8x128xf32>
    %139 = vector.extract_strided_slice %137 {offsets = [0, 32], sizes = [8, 32], strides = [1, 1]} : vector<8x128xf32> to vector<8x32xf32>
    %140 = arith.mulf %139, %93 : vector<8x32xf32>
    %141 = vector.extract_strided_slice %137 {offsets = [0, 0], sizes = [8, 32], strides = [1, 1]} : vector<8x128xf32> to vector<8x32xf32>
    %142 = vector.extract_strided_slice %138 {offsets = [0, 64], sizes = [8, 32], strides = [1, 1]} : vector<8x128xf32> to vector<8x32xf32>
    %143 = arith.mulf %141, %142 : vector<8x32xf32>
    %144 = arith.addf %140, %143 : vector<8x32xf32>
    %145 = vector.extract_strided_slice %137 {offsets = [0, 96], sizes = [8, 32], strides = [1, 1]} : vector<8x128xf32> to vector<8x32xf32>
    %146 = math.tanh %144 : vector<8x32xf32>
    %147 = arith.mulf %145, %146 : vector<8x32xf32>
    %c0_61 = arith.constant 0 : index
    %c0_62 = arith.constant 0 : index
    %148 = vector.load %arg14[%c0_61, %c0_62] : memref<8x64xf32, #tpu.memory_space<vmem>>, vector<8x32xf32>
    tpu.vector_store %arg14[%c0_61, %c0_62], %147 {strides = array<i32>} : memref<8x64xf32, #tpu.memory_space<vmem>>, vector<8x32xf32>,
    %c0_63 = arith.constant 0 : index
    %c0_64 = arith.constant 0 : index
    %149 = vector.load %arg14[%c0_63, %c0_64] : memref<8x64xf32, #tpu.memory_space<vmem>>, vector<8x64xf32>
    %150 = arith.truncf %149 : vector<8x64xf32> to vector<8x64xbf16>
    %cst_65 = arith.constant dense<0.000000e+00> : vector<8x128xf32>
    %151 = tpu.matmul %150, %19, %cst_65 {dimension_numbers = #tpu.dot_dimension_numbers<[1], [0], [0], [1], [0, 0, 1, 1], [], []>} : vector<8x64xbf16>, vector<64x128xbf16>, vector<8x128xf32> -> vector<8x128xf32>
    %152 = vector.broadcast %20 : vector<1x128xf32> to vector<8x128xf32>
    %153 = arith.addf %151, %152 : vector<8x128xf32>
    %154 = arith.negf %153 : vector<8x128xf32>
    %155 = math.exp %154 : vector<8x128xf32>
    %cst_66 = arith.constant 1.000000e+00 : f32
    %156 = vector.broadcast %cst_66 : f32 to vector<8x128xf32>
    %157 = arith.addf %156, %155 : vector<8x128xf32>
    %158 = arith.divf %156, %157 : vector<8x128xf32>
    %159 = math.tanh %153 : vector<8x128xf32>
    %160 = vector.extract_strided_slice %158 {offsets = [0, 32], sizes = [8, 32], strides = [1, 1]} : vector<8x128xf32> to vector<8x32xf32>
    %161 = arith.mulf %160, %114 : vector<8x32xf32>
    %162 = vector.extract_strided_slice %158 {offsets = [0, 0], sizes = [8, 32], strides = [1, 1]} : vector<8x128xf32> to vector<8x32xf32>
    %163 = vector.extract_strided_slice %159 {offsets = [0, 64], sizes = [8, 32], strides = [1, 1]} : vector<8x128xf32> to vector<8x32xf32>
    %164 = arith.mulf %162, %163 : vector<8x32xf32>
    %165 = arith.addf %161, %164 : vector<8x32xf32>
    %166 = vector.extract_strided_slice %158 {offsets = [0, 96], sizes = [8, 32], strides = [1, 1]} : vector<8x128xf32> to vector<8x32xf32>
    %167 = math.tanh %165 : vector<8x32xf32>
    %168 = arith.mulf %166, %167 : vector<8x32xf32>
    %c0_67 = arith.constant 0 : index
    %c32_68 = arith.constant 32 : index
    %169 = vector.load %arg14[%c0_67, %c32_68] : memref<8x64xf32, #tpu.memory_space<vmem>>, vector<8x32xf32>
    tpu.vector_store %arg14[%c0_67, %c32_68], %168 {strides = array<i32>} : memref<8x64xf32, #tpu.memory_space<vmem>>, vector<8x32xf32>,
    %c1_i32_69 = arith.constant 1 : i32
    %170 = arith.addi %c2_i32, %c1_i32_69 : i32
    %171 = vector.broadcast %170 : i32 to vector<8x1xi32>
    %172 = arith.cmpi eq, %21, %171 : vector<8x1xi32>
    %173 = vector.shape_cast %172 : vector<8x1xi1> to vector<8x1xi1>
    %174 = vector.broadcast %173 : vector<8x1xi1> to vector<8x32xi1>
    %175 = arith.select %174, %168, %124 : vector<8x32xi1>, vector<8x32xf32>
    %c3_i32 = arith.constant 3 : i32
    %176 = arith.index_cast %c3_i32 : i32 to index
    %c0_70 = arith.constant 0 : index
    %c0_71 = arith.constant 0 : index
    %177 = vector.load %arg13[%176, %c0_70, %c0_71] : memref<8x8x128xbf16, #tpu.memory_space<vmem>>, vector<1x8x128xbf16>
    %178 = vector.shape_cast %177 : vector<1x8x128xbf16> to vector<8x128xbf16>
    %c0_72 = arith.constant 0 : index
    %c0_73 = arith.constant 0 : index
    %179 = vector.load %arg14[%c0_72, %c0_73] : memref<8x64xf32, #tpu.memory_space<vmem>>, vector<8x32xf32>
    %180 = arith.truncf %179 : vector<8x32xf32> to vector<8x32xbf16>
    %cst_74 = arith.constant dense<0.000000e+00> : vector<8x128xf32>
    %181 = tpu.matmul %180, %18, %cst_74 {dimension_numbers = #tpu.dot_dimension_numbers<[1], [0], [0], [1], [0, 0, 1, 1], [], []>} : vector<8x32xbf16>, vector<32x128xbf16>, vector<8x128xf32> -> vector<8x128xf32>
    %182 = arith.extf %178 : vector<8x128xbf16> to vector<8x128xf32>
    %183 = arith.addf %182, %181 : vector<8x128xf32>
    %184 = arith.negf %183 : vector<8x128xf32>
    %185 = math.exp %184 : vector<8x128xf32>
    %cst_75 = arith.constant 1.000000e+00 : f32
    %186 = vector.broadcast %cst_75 : f32 to vector<8x128xf32>
    %187 = arith.addf %186, %185 : vector<8x128xf32>
    %188 = arith.divf %186, %187 : vector<8x128xf32>
    %189 = math.tanh %183 : vector<8x128xf32>
    %190 = vector.extract_strided_slice %188 {offsets = [0, 32], sizes = [8, 32], strides = [1, 1]} : vector<8x128xf32> to vector<8x32xf32>
    %191 = arith.mulf %190, %144 : vector<8x32xf32>
    %192 = vector.extract_strided_slice %188 {offsets = [0, 0], sizes = [8, 32], strides = [1, 1]} : vector<8x128xf32> to vector<8x32xf32>
    %193 = vector.extract_strided_slice %189 {offsets = [0, 64], sizes = [8, 32], strides = [1, 1]} : vector<8x128xf32> to vector<8x32xf32>
    %194 = arith.mulf %192, %193 : vector<8x32xf32>
    %195 = arith.addf %191, %194 : vector<8x32xf32>
    %196 = vector.extract_strided_slice %188 {offsets = [0, 96], sizes = [8, 32], strides = [1, 1]} : vector<8x128xf32> to vector<8x32xf32>
    %197 = math.tanh %195 : vector<8x32xf32>
    %198 = arith.mulf %196, %197 : vector<8x32xf32>
    %c0_76 = arith.constant 0 : index
    %c0_77 = arith.constant 0 : index
    %199 = vector.load %arg14[%c0_76, %c0_77] : memref<8x64xf32, #tpu.memory_space<vmem>>, vector<8x32xf32>
    tpu.vector_store %arg14[%c0_76, %c0_77], %198 {strides = array<i32>} : memref<8x64xf32, #tpu.memory_space<vmem>>, vector<8x32xf32>,
    %c0_78 = arith.constant 0 : index
    %c0_79 = arith.constant 0 : index
    %200 = vector.load %arg14[%c0_78, %c0_79] : memref<8x64xf32, #tpu.memory_space<vmem>>, vector<8x64xf32>
    %201 = arith.truncf %200 : vector<8x64xf32> to vector<8x64xbf16>
    %cst_80 = arith.constant dense<0.000000e+00> : vector<8x128xf32>
    %202 = tpu.matmul %201, %19, %cst_80 {dimension_numbers = #tpu.dot_dimension_numbers<[1], [0], [0], [1], [0, 0, 1, 1], [], []>} : vector<8x64xbf16>, vector<64x128xbf16>, vector<8x128xf32> -> vector<8x128xf32>
    %203 = vector.broadcast %20 : vector<1x128xf32> to vector<8x128xf32>
    %204 = arith.addf %202, %203 : vector<8x128xf32>
    %205 = arith.negf %204 : vector<8x128xf32>
    %206 = math.exp %205 : vector<8x128xf32>
    %cst_81 = arith.constant 1.000000e+00 : f32
    %207 = vector.broadcast %cst_81 : f32 to vector<8x128xf32>
    %208 = arith.addf %207, %206 : vector<8x128xf32>
    %209 = arith.divf %207, %208 : vector<8x128xf32>
    %210 = math.tanh %204 : vector<8x128xf32>
    %211 = vector.extract_strided_slice %209 {offsets = [0, 32], sizes = [8, 32], strides = [1, 1]} : vector<8x128xf32> to vector<8x32xf32>
    %212 = arith.mulf %211, %165 : vector<8x32xf32>
    %213 = vector.extract_strided_slice %209 {offsets = [0, 0], sizes = [8, 32], strides = [1, 1]} : vector<8x128xf32> to vector<8x32xf32>
    %214 = vector.extract_strided_slice %210 {offsets = [0, 64], sizes = [8, 32], strides = [1, 1]} : vector<8x128xf32> to vector<8x32xf32>
    %215 = arith.mulf %213, %214 : vector<8x32xf32>
    %216 = arith.addf %212, %215 : vector<8x32xf32>
    %217 = vector.extract_strided_slice %209 {offsets = [0, 96], sizes = [8, 32], strides = [1, 1]} : vector<8x128xf32> to vector<8x32xf32>
    %218 = math.tanh %216 : vector<8x32xf32>
    %219 = arith.mulf %217, %218 : vector<8x32xf32>
    %c0_82 = arith.constant 0 : index
    %c32_83 = arith.constant 32 : index
    %220 = vector.load %arg14[%c0_82, %c32_83] : memref<8x64xf32, #tpu.memory_space<vmem>>, vector<8x32xf32>
    tpu.vector_store %arg14[%c0_82, %c32_83], %219 {strides = array<i32>} : memref<8x64xf32, #tpu.memory_space<vmem>>, vector<8x32xf32>,
    %c1_i32_84 = arith.constant 1 : i32
    %221 = arith.addi %c3_i32, %c1_i32_84 : i32
    %222 = vector.broadcast %221 : i32 to vector<8x1xi32>
    %223 = arith.cmpi eq, %21, %222 : vector<8x1xi32>
    %224 = vector.shape_cast %223 : vector<8x1xi1> to vector<8x1xi1>
    %225 = vector.broadcast %224 : vector<8x1xi1> to vector<8x32xi1>
    %226 = arith.select %225, %219, %175 : vector<8x32xi1>, vector<8x32xf32>
    %c4_i32 = arith.constant 4 : i32
    %227 = arith.index_cast %c4_i32 : i32 to index
    %c0_85 = arith.constant 0 : index
    %c0_86 = arith.constant 0 : index
    %228 = vector.load %arg13[%227, %c0_85, %c0_86] : memref<8x8x128xbf16, #tpu.memory_space<vmem>>, vector<1x8x128xbf16>
    %229 = vector.shape_cast %228 : vector<1x8x128xbf16> to vector<8x128xbf16>
    %c0_87 = arith.constant 0 : index
    %c0_88 = arith.constant 0 : index
    %230 = vector.load %arg14[%c0_87, %c0_88] : memref<8x64xf32, #tpu.memory_space<vmem>>, vector<8x32xf32>
    %231 = arith.truncf %230 : vector<8x32xf32> to vector<8x32xbf16>
    %cst_89 = arith.constant dense<0.000000e+00> : vector<8x128xf32>
    %232 = tpu.matmul %231, %18, %cst_89 {dimension_numbers = #tpu.dot_dimension_numbers<[1], [0], [0], [1], [0, 0, 1, 1], [], []>} : vector<8x32xbf16>, vector<32x128xbf16>, vector<8x128xf32> -> vector<8x128xf32>
    %233 = arith.extf %229 : vector<8x128xbf16> to vector<8x128xf32>
    %234 = arith.addf %233, %232 : vector<8x128xf32>
    %235 = arith.negf %234 : vector<8x128xf32>
    %236 = math.exp %235 : vector<8x128xf32>
    %cst_90 = arith.constant 1.000000e+00 : f32
    %237 = vector.broadcast %cst_90 : f32 to vector<8x128xf32>
    %238 = arith.addf %237, %236 : vector<8x128xf32>
    %239 = arith.divf %237, %238 : vector<8x128xf32>
    %240 = math.tanh %234 : vector<8x128xf32>
    %241 = vector.extract_strided_slice %239 {offsets = [0, 32], sizes = [8, 32], strides = [1, 1]} : vector<8x128xf32> to vector<8x32xf32>
    %242 = arith.mulf %241, %195 : vector<8x32xf32>
    %243 = vector.extract_strided_slice %239 {offsets = [0, 0], sizes = [8, 32], strides = [1, 1]} : vector<8x128xf32> to vector<8x32xf32>
    %244 = vector.extract_strided_slice %240 {offsets = [0, 64], sizes = [8, 32], strides = [1, 1]} : vector<8x128xf32> to vector<8x32xf32>
    %245 = arith.mulf %243, %244 : vector<8x32xf32>
    %246 = arith.addf %242, %245 : vector<8x32xf32>
    %247 = vector.extract_strided_slice %239 {offsets = [0, 96], sizes = [8, 32], strides = [1, 1]} : vector<8x128xf32> to vector<8x32xf32>
    %248 = math.tanh %246 : vector<8x32xf32>
    %249 = arith.mulf %247, %248 : vector<8x32xf32>
    %c0_91 = arith.constant 0 : index
    %c0_92 = arith.constant 0 : index
    %250 = vector.load %arg14[%c0_91, %c0_92] : memref<8x64xf32, #tpu.memory_space<vmem>>, vector<8x32xf32>
    tpu.vector_store %arg14[%c0_91, %c0_92], %249 {strides = array<i32>} : memref<8x64xf32, #tpu.memory_space<vmem>>, vector<8x32xf32>,
    %c0_93 = arith.constant 0 : index
    %c0_94 = arith.constant 0 : index
    %251 = vector.load %arg14[%c0_93, %c0_94] : memref<8x64xf32, #tpu.memory_space<vmem>>, vector<8x64xf32>
    %252 = arith.truncf %251 : vector<8x64xf32> to vector<8x64xbf16>
    %cst_95 = arith.constant dense<0.000000e+00> : vector<8x128xf32>
    %253 = tpu.matmul %252, %19, %cst_95 {dimension_numbers = #tpu.dot_dimension_numbers<[1], [0], [0], [1], [0, 0, 1, 1], [], []>} : vector<8x64xbf16>, vector<64x128xbf16>, vector<8x128xf32> -> vector<8x128xf32>
    %254 = vector.broadcast %20 : vector<1x128xf32> to vector<8x128xf32>
    %255 = arith.addf %253, %254 : vector<8x128xf32>
    %256 = arith.negf %255 : vector<8x128xf32>
    %257 = math.exp %256 : vector<8x128xf32>
    %cst_96 = arith.constant 1.000000e+00 : f32
    %258 = vector.broadcast %cst_96 : f32 to vector<8x128xf32>
    %259 = arith.addf %258, %257 : vector<8x128xf32>
    %260 = arith.divf %258, %259 : vector<8x128xf32>
    %261 = math.tanh %255 : vector<8x128xf32>
    %262 = vector.extract_strided_slice %260 {offsets = [0, 32], sizes = [8, 32], strides = [1, 1]} : vector<8x128xf32> to vector<8x32xf32>
    %263 = arith.mulf %262, %216 : vector<8x32xf32>
    %264 = vector.extract_strided_slice %260 {offsets = [0, 0], sizes = [8, 32], strides = [1, 1]} : vector<8x128xf32> to vector<8x32xf32>
    %265 = vector.extract_strided_slice %261 {offsets = [0, 64], sizes = [8, 32], strides = [1, 1]} : vector<8x128xf32> to vector<8x32xf32>
    %266 = arith.mulf %264, %265 : vector<8x32xf32>
    %267 = arith.addf %263, %266 : vector<8x32xf32>
    %268 = vector.extract_strided_slice %260 {offsets = [0, 96], sizes = [8, 32], strides = [1, 1]} : vector<8x128xf32> to vector<8x32xf32>
    %269 = math.tanh %267 : vector<8x32xf32>
    %270 = arith.mulf %268, %269 : vector<8x32xf32>
    %c0_97 = arith.constant 0 : index
    %c32_98 = arith.constant 32 : index
    %271 = vector.load %arg14[%c0_97, %c32_98] : memref<8x64xf32, #tpu.memory_space<vmem>>, vector<8x32xf32>
    tpu.vector_store %arg14[%c0_97, %c32_98], %270 {strides = array<i32>} : memref<8x64xf32, #tpu.memory_space<vmem>>, vector<8x32xf32>,
    %c1_i32_99 = arith.constant 1 : i32
    %272 = arith.addi %c4_i32, %c1_i32_99 : i32
    %273 = vector.broadcast %272 : i32 to vector<8x1xi32>
    %274 = arith.cmpi eq, %21, %273 : vector<8x1xi32>
    %275 = vector.shape_cast %274 : vector<8x1xi1> to vector<8x1xi1>
    %276 = vector.broadcast %275 : vector<8x1xi1> to vector<8x32xi1>
    %277 = arith.select %276, %270, %226 : vector<8x32xi1>, vector<8x32xf32>
    %c5_i32 = arith.constant 5 : i32
    %278 = arith.index_cast %c5_i32 : i32 to index
    %c0_100 = arith.constant 0 : index
    %c0_101 = arith.constant 0 : index
    %279 = vector.load %arg13[%278, %c0_100, %c0_101] : memref<8x8x128xbf16, #tpu.memory_space<vmem>>, vector<1x8x128xbf16>
    %280 = vector.shape_cast %279 : vector<1x8x128xbf16> to vector<8x128xbf16>
    %c0_102 = arith.constant 0 : index
    %c0_103 = arith.constant 0 : index
    %281 = vector.load %arg14[%c0_102, %c0_103] : memref<8x64xf32, #tpu.memory_space<vmem>>, vector<8x32xf32>
    %282 = arith.truncf %281 : vector<8x32xf32> to vector<8x32xbf16>
    %cst_104 = arith.constant dense<0.000000e+00> : vector<8x128xf32>
    %283 = tpu.matmul %282, %18, %cst_104 {dimension_numbers = #tpu.dot_dimension_numbers<[1], [0], [0], [1], [0, 0, 1, 1], [], []>} : vector<8x32xbf16>, vector<32x128xbf16>, vector<8x128xf32> -> vector<8x128xf32>
    %284 = arith.extf %280 : vector<8x128xbf16> to vector<8x128xf32>
    %285 = arith.addf %284, %283 : vector<8x128xf32>
    %286 = arith.negf %285 : vector<8x128xf32>
    %287 = math.exp %286 : vector<8x128xf32>
    %cst_105 = arith.constant 1.000000e+00 : f32
    %288 = vector.broadcast %cst_105 : f32 to vector<8x128xf32>
    %289 = arith.addf %288, %287 : vector<8x128xf32>
    %290 = arith.divf %288, %289 : vector<8x128xf32>
    %291 = math.tanh %285 : vector<8x128xf32>
    %292 = vector.extract_strided_slice %290 {offsets = [0, 32], sizes = [8, 32], strides = [1, 1]} : vector<8x128xf32> to vector<8x32xf32>
    %293 = arith.mulf %292, %246 : vector<8x32xf32>
    %294 = vector.extract_strided_slice %290 {offsets = [0, 0], sizes = [8, 32], strides = [1, 1]} : vector<8x128xf32> to vector<8x32xf32>
    %295 = vector.extract_strided_slice %291 {offsets = [0, 64], sizes = [8, 32], strides = [1, 1]} : vector<8x128xf32> to vector<8x32xf32>
    %296 = arith.mulf %294, %295 : vector<8x32xf32>
    %297 = arith.addf %293, %296 : vector<8x32xf32>
    %298 = vector.extract_strided_slice %290 {offsets = [0, 96], sizes = [8, 32], strides = [1, 1]} : vector<8x128xf32> to vector<8x32xf32>
    %299 = math.tanh %297 : vector<8x32xf32>
    %300 = arith.mulf %298, %299 : vector<8x32xf32>
    %c0_106 = arith.constant 0 : index
    %c0_107 = arith.constant 0 : index
    %301 = vector.load %arg14[%c0_106, %c0_107] : memref<8x64xf32, #tpu.memory_space<vmem>>, vector<8x32xf32>
    tpu.vector_store %arg14[%c0_106, %c0_107], %300 {strides = array<i32>} : memref<8x64xf32, #tpu.memory_space<vmem>>, vector<8x32xf32>,
    %c0_108 = arith.constant 0 : index
    %c0_109 = arith.constant 0 : index
    %302 = vector.load %arg14[%c0_108, %c0_109] : memref<8x64xf32, #tpu.memory_space<vmem>>, vector<8x64xf32>
    %303 = arith.truncf %302 : vector<8x64xf32> to vector<8x64xbf16>
    %cst_110 = arith.constant dense<0.000000e+00> : vector<8x128xf32>
    %304 = tpu.matmul %303, %19, %cst_110 {dimension_numbers = #tpu.dot_dimension_numbers<[1], [0], [0], [1], [0, 0, 1, 1], [], []>} : vector<8x64xbf16>, vector<64x128xbf16>, vector<8x128xf32> -> vector<8x128xf32>
    %305 = vector.broadcast %20 : vector<1x128xf32> to vector<8x128xf32>
    %306 = arith.addf %304, %305 : vector<8x128xf32>
    %307 = arith.negf %306 : vector<8x128xf32>
    %308 = math.exp %307 : vector<8x128xf32>
    %cst_111 = arith.constant 1.000000e+00 : f32
    %309 = vector.broadcast %cst_111 : f32 to vector<8x128xf32>
    %310 = arith.addf %309, %308 : vector<8x128xf32>
    %311 = arith.divf %309, %310 : vector<8x128xf32>
    %312 = math.tanh %306 : vector<8x128xf32>
    %313 = vector.extract_strided_slice %311 {offsets = [0, 32], sizes = [8, 32], strides = [1, 1]} : vector<8x128xf32> to vector<8x32xf32>
    %314 = arith.mulf %313, %267 : vector<8x32xf32>
    %315 = vector.extract_strided_slice %311 {offsets = [0, 0], sizes = [8, 32], strides = [1, 1]} : vector<8x128xf32> to vector<8x32xf32>
    %316 = vector.extract_strided_slice %312 {offsets = [0, 64], sizes = [8, 32], strides = [1, 1]} : vector<8x128xf32> to vector<8x32xf32>
    %317 = arith.mulf %315, %316 : vector<8x32xf32>
    %318 = arith.addf %314, %317 : vector<8x32xf32>
    %319 = vector.extract_strided_slice %311 {offsets = [0, 96], sizes = [8, 32], strides = [1, 1]} : vector<8x128xf32> to vector<8x32xf32>
    %320 = math.tanh %318 : vector<8x32xf32>
    %321 = arith.mulf %319, %320 : vector<8x32xf32>
    %c0_112 = arith.constant 0 : index
    %c32_113 = arith.constant 32 : index
    %322 = vector.load %arg14[%c0_112, %c32_113] : memref<8x64xf32, #tpu.memory_space<vmem>>, vector<8x32xf32>
    tpu.vector_store %arg14[%c0_112, %c32_113], %321 {strides = array<i32>} : memref<8x64xf32, #tpu.memory_space<vmem>>, vector<8x32xf32>,
    %c1_i32_114 = arith.constant 1 : i32
    %323 = arith.addi %c5_i32, %c1_i32_114 : i32
    %324 = vector.broadcast %323 : i32 to vector<8x1xi32>
    %325 = arith.cmpi eq, %21, %324 : vector<8x1xi32>
    %326 = vector.shape_cast %325 : vector<8x1xi1> to vector<8x1xi1>
    %327 = vector.broadcast %326 : vector<8x1xi1> to vector<8x32xi1>
    %328 = arith.select %327, %321, %277 : vector<8x32xi1>, vector<8x32xf32>
    %c6_i32 = arith.constant 6 : i32
    %329 = arith.index_cast %c6_i32 : i32 to index
    %c0_115 = arith.constant 0 : index
    %c0_116 = arith.constant 0 : index
    %330 = vector.load %arg13[%329, %c0_115, %c0_116] : memref<8x8x128xbf16, #tpu.memory_space<vmem>>, vector<1x8x128xbf16>
    %331 = vector.shape_cast %330 : vector<1x8x128xbf16> to vector<8x128xbf16>
    %c0_117 = arith.constant 0 : index
    %c0_118 = arith.constant 0 : index
    %332 = vector.load %arg14[%c0_117, %c0_118] : memref<8x64xf32, #tpu.memory_space<vmem>>, vector<8x32xf32>
    %333 = arith.truncf %332 : vector<8x32xf32> to vector<8x32xbf16>
    %cst_119 = arith.constant dense<0.000000e+00> : vector<8x128xf32>
    %334 = tpu.matmul %333, %18, %cst_119 {dimension_numbers = #tpu.dot_dimension_numbers<[1], [0], [0], [1], [0, 0, 1, 1], [], []>} : vector<8x32xbf16>, vector<32x128xbf16>, vector<8x128xf32> -> vector<8x128xf32>
    %335 = arith.extf %331 : vector<8x128xbf16> to vector<8x128xf32>
    %336 = arith.addf %335, %334 : vector<8x128xf32>
    %337 = arith.negf %336 : vector<8x128xf32>
    %338 = math.exp %337 : vector<8x128xf32>
    %cst_120 = arith.constant 1.000000e+00 : f32
    %339 = vector.broadcast %cst_120 : f32 to vector<8x128xf32>
    %340 = arith.addf %339, %338 : vector<8x128xf32>
    %341 = arith.divf %339, %340 : vector<8x128xf32>
    %342 = math.tanh %336 : vector<8x128xf32>
    %343 = vector.extract_strided_slice %341 {offsets = [0, 32], sizes = [8, 32], strides = [1, 1]} : vector<8x128xf32> to vector<8x32xf32>
    %344 = arith.mulf %343, %297 : vector<8x32xf32>
    %345 = vector.extract_strided_slice %341 {offsets = [0, 0], sizes = [8, 32], strides = [1, 1]} : vector<8x128xf32> to vector<8x32xf32>
    %346 = vector.extract_strided_slice %342 {offsets = [0, 64], sizes = [8, 32], strides = [1, 1]} : vector<8x128xf32> to vector<8x32xf32>
    %347 = arith.mulf %345, %346 : vector<8x32xf32>
    %348 = arith.addf %344, %347 : vector<8x32xf32>
    %349 = vector.extract_strided_slice %341 {offsets = [0, 96], sizes = [8, 32], strides = [1, 1]} : vector<8x128xf32> to vector<8x32xf32>
    %350 = math.tanh %348 : vector<8x32xf32>
    %351 = arith.mulf %349, %350 : vector<8x32xf32>
    %c0_121 = arith.constant 0 : index
    %c0_122 = arith.constant 0 : index
    %352 = vector.load %arg14[%c0_121, %c0_122] : memref<8x64xf32, #tpu.memory_space<vmem>>, vector<8x32xf32>
    tpu.vector_store %arg14[%c0_121, %c0_122], %351 {strides = array<i32>} : memref<8x64xf32, #tpu.memory_space<vmem>>, vector<8x32xf32>,
    %c0_123 = arith.constant 0 : index
    %c0_124 = arith.constant 0 : index
    %353 = vector.load %arg14[%c0_123, %c0_124] : memref<8x64xf32, #tpu.memory_space<vmem>>, vector<8x64xf32>
    %354 = arith.truncf %353 : vector<8x64xf32> to vector<8x64xbf16>
    %cst_125 = arith.constant dense<0.000000e+00> : vector<8x128xf32>
    %355 = tpu.matmul %354, %19, %cst_125 {dimension_numbers = #tpu.dot_dimension_numbers<[1], [0], [0], [1], [0, 0, 1, 1], [], []>} : vector<8x64xbf16>, vector<64x128xbf16>, vector<8x128xf32> -> vector<8x128xf32>
    %356 = vector.broadcast %20 : vector<1x128xf32> to vector<8x128xf32>
    %357 = arith.addf %355, %356 : vector<8x128xf32>
    %358 = arith.negf %357 : vector<8x128xf32>
    %359 = math.exp %358 : vector<8x128xf32>
    %cst_126 = arith.constant 1.000000e+00 : f32
    %360 = vector.broadcast %cst_126 : f32 to vector<8x128xf32>
    %361 = arith.addf %360, %359 : vector<8x128xf32>
    %362 = arith.divf %360, %361 : vector<8x128xf32>
    %363 = math.tanh %357 : vector<8x128xf32>
    %364 = vector.extract_strided_slice %362 {offsets = [0, 32], sizes = [8, 32], strides = [1, 1]} : vector<8x128xf32> to vector<8x32xf32>
    %365 = arith.mulf %364, %318 : vector<8x32xf32>
    %366 = vector.extract_strided_slice %362 {offsets = [0, 0], sizes = [8, 32], strides = [1, 1]} : vector<8x128xf32> to vector<8x32xf32>
    %367 = vector.extract_strided_slice %363 {offsets = [0, 64], sizes = [8, 32], strides = [1, 1]} : vector<8x128xf32> to vector<8x32xf32>
    %368 = arith.mulf %366, %367 : vector<8x32xf32>
    %369 = arith.addf %365, %368 : vector<8x32xf32>
    %370 = vector.extract_strided_slice %362 {offsets = [0, 96], sizes = [8, 32], strides = [1, 1]} : vector<8x128xf32> to vector<8x32xf32>
    %371 = math.tanh %369 : vector<8x32xf32>
    %372 = arith.mulf %370, %371 : vector<8x32xf32>
    %c0_127 = arith.constant 0 : index
    %c32_128 = arith.constant 32 : index
    %373 = vector.load %arg14[%c0_127, %c32_128] : memref<8x64xf32, #tpu.memory_space<vmem>>, vector<8x32xf32>
    tpu.vector_store %arg14[%c0_127, %c32_128], %372 {strides = array<i32>} : memref<8x64xf32, #tpu.memory_space<vmem>>, vector<8x32xf32>,
    %c1_i32_129 = arith.constant 1 : i32
    %374 = arith.addi %c6_i32, %c1_i32_129 : i32
    %375 = vector.broadcast %374 : i32 to vector<8x1xi32>
    %376 = arith.cmpi eq, %21, %375 : vector<8x1xi32>
    %377 = vector.shape_cast %376 : vector<8x1xi1> to vector<8x1xi1>
    %378 = vector.broadcast %377 : vector<8x1xi1> to vector<8x32xi1>
    %379 = arith.select %378, %372, %328 : vector<8x32xi1>, vector<8x32xf32>
    %c7_i32 = arith.constant 7 : i32
    %380 = arith.index_cast %c7_i32 : i32 to index
    %c0_130 = arith.constant 0 : index
    %c0_131 = arith.constant 0 : index
    %381 = vector.load %arg13[%380, %c0_130, %c0_131] : memref<8x8x128xbf16, #tpu.memory_space<vmem>>, vector<1x8x128xbf16>
    %382 = vector.shape_cast %381 : vector<1x8x128xbf16> to vector<8x128xbf16>
    %c0_132 = arith.constant 0 : index
    %c0_133 = arith.constant 0 : index
    %383 = vector.load %arg14[%c0_132, %c0_133] : memref<8x64xf32, #tpu.memory_space<vmem>>, vector<8x32xf32>
    %384 = arith.truncf %383 : vector<8x32xf32> to vector<8x32xbf16>
    %cst_134 = arith.constant dense<0.000000e+00> : vector<8x128xf32>
    %385 = tpu.matmul %384, %18, %cst_134 {dimension_numbers = #tpu.dot_dimension_numbers<[1], [0], [0], [1], [0, 0, 1, 1], [], []>} : vector<8x32xbf16>, vector<32x128xbf16>, vector<8x128xf32> -> vector<8x128xf32>
    %386 = arith.extf %382 : vector<8x128xbf16> to vector<8x128xf32>
    %387 = arith.addf %386, %385 : vector<8x128xf32>
    %388 = arith.negf %387 : vector<8x128xf32>
    %389 = math.exp %388 : vector<8x128xf32>
    %cst_135 = arith.constant 1.000000e+00 : f32
    %390 = vector.broadcast %cst_135 : f32 to vector<8x128xf32>
    %391 = arith.addf %390, %389 : vector<8x128xf32>
    %392 = arith.divf %390, %391 : vector<8x128xf32>
    %393 = math.tanh %387 : vector<8x128xf32>
    %394 = vector.extract_strided_slice %392 {offsets = [0, 32], sizes = [8, 32], strides = [1, 1]} : vector<8x128xf32> to vector<8x32xf32>
    %395 = arith.mulf %394, %348 : vector<8x32xf32>
    %396 = vector.extract_strided_slice %392 {offsets = [0, 0], sizes = [8, 32], strides = [1, 1]} : vector<8x128xf32> to vector<8x32xf32>
    %397 = vector.extract_strided_slice %393 {offsets = [0, 64], sizes = [8, 32], strides = [1, 1]} : vector<8x128xf32> to vector<8x32xf32>
    %398 = arith.mulf %396, %397 : vector<8x32xf32>
    %399 = arith.addf %395, %398 : vector<8x32xf32>
    %400 = vector.extract_strided_slice %392 {offsets = [0, 96], sizes = [8, 32], strides = [1, 1]} : vector<8x128xf32> to vector<8x32xf32>
    %401 = math.tanh %399 : vector<8x32xf32>
    %402 = arith.mulf %400, %401 : vector<8x32xf32>
    %c0_136 = arith.constant 0 : index
    %c0_137 = arith.constant 0 : index
    %403 = vector.load %arg14[%c0_136, %c0_137] : memref<8x64xf32, #tpu.memory_space<vmem>>, vector<8x32xf32>
    tpu.vector_store %arg14[%c0_136, %c0_137], %402 {strides = array<i32>} : memref<8x64xf32, #tpu.memory_space<vmem>>, vector<8x32xf32>,
    %c0_138 = arith.constant 0 : index
    %c0_139 = arith.constant 0 : index
    %404 = vector.load %arg14[%c0_138, %c0_139] : memref<8x64xf32, #tpu.memory_space<vmem>>, vector<8x64xf32>
    %405 = arith.truncf %404 : vector<8x64xf32> to vector<8x64xbf16>
    %cst_140 = arith.constant dense<0.000000e+00> : vector<8x128xf32>
    %406 = tpu.matmul %405, %19, %cst_140 {dimension_numbers = #tpu.dot_dimension_numbers<[1], [0], [0], [1], [0, 0, 1, 1], [], []>} : vector<8x64xbf16>, vector<64x128xbf16>, vector<8x128xf32> -> vector<8x128xf32>
    %407 = vector.broadcast %20 : vector<1x128xf32> to vector<8x128xf32>
    %408 = arith.addf %406, %407 : vector<8x128xf32>
    %409 = arith.negf %408 : vector<8x128xf32>
    %410 = math.exp %409 : vector<8x128xf32>
    %cst_141 = arith.constant 1.000000e+00 : f32
    %411 = vector.broadcast %cst_141 : f32 to vector<8x128xf32>
    %412 = arith.addf %411, %410 : vector<8x128xf32>
    %413 = arith.divf %411, %412 : vector<8x128xf32>
    %414 = math.tanh %408 : vector<8x128xf32>
    %415 = vector.extract_strided_slice %413 {offsets = [0, 32], sizes = [8, 32], strides = [1, 1]} : vector<8x128xf32> to vector<8x32xf32>
    %416 = arith.mulf %415, %369 : vector<8x32xf32>
    %417 = vector.extract_strided_slice %413 {offsets = [0, 0], sizes = [8, 32], strides = [1, 1]} : vector<8x128xf32> to vector<8x32xf32>
    %418 = vector.extract_strided_slice %414 {offsets = [0, 64], sizes = [8, 32], strides = [1, 1]} : vector<8x128xf32> to vector<8x32xf32>
    %419 = arith.mulf %417, %418 : vector<8x32xf32>
    %420 = arith.addf %416, %419 : vector<8x32xf32>
    %421 = vector.extract_strided_slice %413 {offsets = [0, 96], sizes = [8, 32], strides = [1, 1]} : vector<8x128xf32> to vector<8x32xf32>
    %422 = math.tanh %420 : vector<8x32xf32>
    %423 = arith.mulf %421, %422 : vector<8x32xf32>
    %c0_142 = arith.constant 0 : index
    %c32_143 = arith.constant 32 : index
    %424 = vector.load %arg14[%c0_142, %c32_143] : memref<8x64xf32, #tpu.memory_space<vmem>>, vector<8x32xf32>
    tpu.vector_store %arg14[%c0_142, %c32_143], %423 {strides = array<i32>} : memref<8x64xf32, #tpu.memory_space<vmem>>, vector<8x32xf32>,
    %c1_i32_144 = arith.constant 1 : i32
    %425 = arith.addi %c7_i32, %c1_i32_144 : i32
    %426 = vector.broadcast %425 : i32 to vector<8x1xi32>
    %427 = arith.cmpi eq, %21, %426 : vector<8x1xi32>
    %428 = vector.shape_cast %427 : vector<8x1xi1> to vector<8x1xi1>
    %429 = vector.broadcast %428 : vector<8x1xi1> to vector<8x32xi1>
    %430 = arith.select %429, %423, %379 : vector<8x32xi1>, vector<8x32xf32>
    %c8_i32 = arith.constant 8 : i32
    %c0_145 = arith.constant 0 : index
    %c0_146 = arith.constant 0 : index
    %431 = vector.load %arg10[%c0_145, %c0_146] : memref<1x32xf32, #tpu.memory_space<vmem>>, vector<1x32xf32>
    %432 = vector.broadcast %431 : vector<1x32xf32> to vector<8x32xf32>
    %433 = arith.mulf %430, %432 : vector<8x32xf32>
    %cst_147 = arith.constant dense<0.000000e+00> : vector<8xf32>
    %434 = vector.multi_reduction <add>, %433, %cst_147 [1] : vector<8x32xf32> to vector<8xf32>
    %435 = vector.shape_cast %434 : vector<8xf32> to vector<8x1xf32>
    %c0_148 = arith.constant 0 : index
    %c0_149 = arith.constant 0 : index
    %436 = vector.load %arg11[%c0_148, %c0_149] : memref<1x1xf32, #tpu.memory_space<vmem>>, vector<1x1xf32>
    %437 = vector.broadcast %436 : vector<1x1xf32> to vector<8x1xf32>
    %438 = arith.addf %435, %437 : vector<8x1xf32>
    %c0_150 = arith.constant 0 : index
    %c0_151 = arith.constant 0 : index
    %439 = vector.load %arg12[%c0_150, %c0_151] : memref<8x1xf32, #tpu.memory_space<vmem>>, vector<8x1xf32>
    tpu.vector_store %arg12[%c0_150, %c0_151], %438 {strides = array<i32>} : memref<8x1xf32, #tpu.memory_space<vmem>>, vector<8x1xf32>,
    return
  }
  func.func @transform_0(%arg0: i32) -> (i32, i32, i32) {
    %c0_i32 = arith.constant 0 : i32
    %c0_i32_0 = arith.constant 0 : i32
    %c0_i32_1 = arith.constant 0 : i32
    return %c0_i32, %arg0, %c0_i32_0 : i32, i32, i32
  }
  func.func @transform_1(%arg0: i32) -> (i32, i32) {
    %c0_i32 = arith.constant 0 : i32
    %c0_i32_0 = arith.constant 0 : i32
    return %arg0, %c0_i32 : i32, i32
  }
  func.func @transform_2(%arg0: i32) -> (i32, i32) {
    %c0_i32 = arith.constant 0 : i32
    %c0_i32_0 = arith.constant 0 : i32
    return %arg0, %c0_i32 : i32, i32
  }
  func.func @transform_3(%arg0: i32) -> (i32, i32) {
    %c0_i32 = arith.constant 0 : i32
    %c0_i32_0 = arith.constant 0 : i32
    %c0_i32_1 = arith.constant 0 : i32
    return %c0_i32, %c0_i32_0 : i32, i32
  }
  func.func @transform_4(%arg0: i32) -> (i32, i32) {
    %c0_i32 = arith.constant 0 : i32
    %c0_i32_0 = arith.constant 0 : i32
    %c0_i32_1 = arith.constant 0 : i32
    return %c0_i32, %c0_i32_0 : i32, i32
  }
  func.func @transform_5(%arg0: i32) -> (i32, i32) {
    %c0_i32 = arith.constant 0 : i32
    %c0_i32_0 = arith.constant 0 : i32
    %c0_i32_1 = arith.constant 0 : i32
    return %c0_i32, %c0_i32_0 : i32, i32
  }
  func.func @transform_6(%arg0: i32) -> (i32, i32) {
    %c0_i32 = arith.constant 0 : i32
    %c0_i32_0 = arith.constant 0 : i32
    %c0_i32_1 = arith.constant 0 : i32
    return %c0_i32, %c0_i32_0 : i32, i32
  }
  func.func @transform_7(%arg0: i32) -> (i32, i32) {
    %c0_i32 = arith.constant 0 : i32
    %c0_i32_0 = arith.constant 0 : i32
    %c0_i32_1 = arith.constant 0 : i32
    return %c0_i32, %c0_i32_0 : i32, i32
  }
  func.func @transform_8(%arg0: i32) -> (i32, i32) {
    %c0_i32 = arith.constant 0 : i32
    %c0_i32_0 = arith.constant 0 : i32
    %c0_i32_1 = arith.constant 0 : i32
    return %c0_i32, %c0_i32_0 : i32, i32
  }
  func.func @transform_9(%arg0: i32) -> (i32, i32) {
    %c0_i32 = arith.constant 0 : i32
    %c0_i32_0 = arith.constant 0 : i32
    %c0_i32_1 = arith.constant 0 : i32
    return %c0_i32, %c0_i32_0 : i32, i32
  }
  func.func @transform_10(%arg0: i32) -> (i32, i32) {
    %c0_i32 = arith.constant 0 : i32
    %c0_i32_0 = arith.constant 0 : i32
    %c0_i32_1 = arith.constant 0 : i32
    return %c0_i32, %c0_i32_0 : i32, i32
  }
  func.func @transform_11(%arg0: i32) -> (i32, i32) {
    %c0_i32 = arith.constant 0 : i32
    %c0_i32_0 = arith.constant 0 : i32
    return %arg0, %c0_i32 : i32, i32
  }
}

</mosaic_0001>

<llo_original>
// kernel: tpu_custom_call.1
$region0: #{tpu_custom_call.1}
  #allocation0 [shape = 'u32[]', space=smem, size = 0x4, offset = 0x4, fixed_abs, tag = 'smem constant byte address 0x4 - core index']
  #allocation1 [shape = 'u32[144,128]{1,0:T(1,128)}', space=vmem, size = 0x12000, scoped, tag = 'internal scratch']
  #allocation2 [shape = 'bf16[8,8,128]{2,1,0:T(8,128)(2,1)}', space=vmem, size = 0x4000, scoped, tag = 'scratch operand']
  #allocation3 [shape = 'f32[8,64]{1,0:T(8,128)}', space=vmem, size = 0x1000, scoped, tag = 'scratch operand']
  #allocation4 [shape = 'f32[1,1]{1,0:T(1,128)S(1)}', space=vmem, size = 0x200, scoped, tag = 'scoped memory for tpu_custom_call.1']
  %s0 = inlined_call_operand.vmem [shape: bf16[8,16,8], index: 0, kind: input, shape index: {}]
  %s1 = inlined_call_operand.vmem [shape: bf16[16,24], index: 1, kind: input, shape index: {}]
  %s2 = inlined_call_operand.vmem [shape: s32[16,1], index: 2, kind: input, shape index: {}]
  %s3 = inlined_call_operand.vmem [shape: bf16[8,128], index: 3, kind: input, shape index: {}]
  %s4 = inlined_call_operand.vmem [shape: bf16[24,128], index: 4, kind: input, shape index: {}]
  %s5 = inlined_call_operand.vmem [shape: bf16[32,128], index: 5, kind: input, shape index: {}]
  %s6 = inlined_call_operand.vmem [shape: bf16[64,128], index: 6, kind: input, shape index: {}]
  %s7 = inlined_call_operand.vmem [shape: f32[1,128], index: 7, kind: input, shape index: {}]
  %s8 = inlined_call_operand.vmem [shape: f32[1,128], index: 8, kind: input, shape index: {}]
  %s9 = inlined_call_operand.vmem [shape: f32[1,32], index: 9, kind: input, shape index: {}]
  %s10 = inlined_call_operand.<no memory space> [shape: f32[1,1], index: 10, kind: input, shape index: {}]
  %s11 = inlined_call_operand.vmem [shape: f32[16,1], index: 11, kind: output, shape index: {}]
  %s12 = sld [smem:[#allocation0]]
  $region118: #{tpu_custom_call.1} parent=0
    _
  %s14 = ssub.s32 1, %s12
  %s15 = scalar_select 0, %s14, %s12
  %v16 = vstv %s10
  %17 = vst [vmem:[#allocation4] sm:$0x1] %v16
  $region1: #{tpu_custom_call.1} parent=0
    #allocation5 [shape = 'u8[32768]{0}', space=vmem, size = 0x8000, scoped, tag = 'input window, operand 0']
    loop: start=0, step=1, limit=4
    $region2: #{tpu_custom_call.1} parent=1 // loop_pre_header
      _
    $region3: #{tpu_custom_call.1} parent=1 // loop_header
      %s19 = sphi 0, %s23
      %p20 = scmp.ge.s32.totalorder %s19, 4
      %s29 = sphi 0, %s31
      %s32 = sphi 0, %s29
      %s33 = sphi 0, %s32
      %s49 = sphi 0, %s33
      %s55 = sphi 0, %s57
      %s58 = sphi 0, %s55
      %s59 = sphi 0, %s58
      %s75 = sphi 0, %s59
      %s81 = sphi 0, %s83
      %s84 = sphi 0, %s81
      %s85 = sphi 0, %s84
      %s101 = sphi 0, %s85
      %s105 = sphi 0, %s105
      %s107 = sphi 0, %s105
      %s108 = sphi 0, %s107
      %s122 = sphi 0, %s108
      %s126 = sphi 0, %s126
      %s128 = sphi 0, %s126
      %s129 = sphi 0, %s128
      %s143 = sphi 0, %s129
      %s147 = sphi 0, %s147
      %s149 = sphi 0, %s147
      %s150 = sphi 0, %s149
      %s164 = sphi 0, %s150
      %s168 = sphi 0, %s168
      %s170 = sphi 0, %s168
      %s171 = sphi 0, %s170
      %s185 = sphi 0, %s171
      %s189 = sphi 0, %s189
      %s191 = sphi 0, %s189
      %s192 = sphi 0, %s191
      %s206 = sphi 0, %s192
      %s210 = sphi 0, %s210
      %s212 = sphi 0, %s210
      %s213 = sphi 0, %s212
      %s227 = sphi 0, %s213
      %s231 = sphi 0, %s231
      %s233 = sphi 0, %s231
      %s234 = sphi 0, %s233
      %s248 = sphi 0, %s234
      %s252 = sphi 0, %s252
      %s254 = sphi 0, %s252
      %s255 = sphi 0, %s254
      %s269 = sphi 0, %s255
      %s275 = sphi 0, %s277
      %s278 = sphi 0, %s275
      %s279 = sphi 0, %s278
      %s295 = sphi 0, %s279
    $region4: #{tpu_custom_call.1} parent=1 // loop_header_branch
      %22 = sbr.rel (%p20) target = $region8
    $region5: #{tpu_custom_call.1} parent=1 // loop_body
      %s24 = ssub.s32 %s19, 1
      %s25 = ssub.s32 %s19, 2
      %s26 = sadd.s32 %s19, 1
      %s27 = ssub.s32 %s19, %s26
      %p28 = scmp.eq.s32.totalorder %s27, 0
      %s30 = sadd.s32 %s29, 1
      %s31 = scalar_select %p28, %s29, %s30
      %p34 = pneg %p28
      %p35 = scmp.eq.s32.totalorder %s19, 1
      %p36 = por %p34, %p35
      %p37 = scmp.ne.s32.totalorder %s29, %s32
      %p38 = scmp.eq.s32.totalorder %s19, 0
      %p39 = por %p37, %p38
      %p40 = scmp.ne.s32.totalorder %s29, %s32
      %p41 = scmp.eq.s32.totalorder %s24, 1
      %p42 = por %p40, %p41
      %p43 = scmp.ne.s32.totalorder %s32, %s33
      %p44 = scmp.eq.s32.totalorder %s24, 0
      %p45 = por %p43, %p44
      %p46 = scmp.ne.s32.totalorder %s32, %s33
      %p47 = scmp.eq.s32.totalorder %s25, 1
      %p48 = por %p46, %p47
      %p50 = scmp.ne.s32.totalorder %s33, %s49
      %p51 = scmp.eq.s32.totalorder %s25, 0
      %p52 = por %p50, %p51
      %s53 = ssub.s32 %s19, %s26
      %p54 = scmp.eq.s32.totalorder %s53, 0
      %s56 = sadd.s32 %s55, 1
      %s57 = scalar_select %p54, %s55, %s56
      %p60 = pneg %p54
      %p61 = scmp.eq.s32.totalorder %s19, 1
      %p62 = por %p60, %p61
      %p63 = scmp.ne.s32.totalorder %s55, %s58
      %p64 = scmp.eq.s32.totalorder %s19, 0
      %p65 = por %p63, %p64
      %p66 = scmp.ne.s32.totalorder %s55, %s58
      %p67 = scmp.eq.s32.totalorder %s24, 1
      %p68 = por %p66, %p67
      %p69 = scmp.ne.s32.totalorder %s58, %s59
      %p70 = scmp.eq.s32.totalorder %s24, 0
      %p71 = por %p69, %p70
      %p72 = scmp.ne.s32.totalorder %s58, %s59
      %p73 = scmp.eq.s32.totalorder %s25, 1
      %p74 = por %p72, %p73
      %p76 = scmp.ne.s32.totalorder %s59, %s75
      %p77 = scmp.eq.s32.totalorder %s25, 0
      %p78 = por %p76, %p77
      %s79 = ssub.s32 %s19, %s26
      %p80 = scmp.eq.s32.totalorder %s79, 0
      %s82 = sadd.s32 %s81, 1
      %s83 = scalar_select %p80, %s81, %s82
      %p86 = pneg %p80
      %p87 = scmp.eq.s32.totalorder %s19, 1
      %p88 = por %p86, %p87
      %p89 = scmp.ne.s32.totalorder %s81, %s84
      %p90 = scmp.eq.s32.totalorder %s19, 0
      %p91 = por %p89, %p90
      %p92 = scmp.ne.s32.totalorder %s81, %s84
      %p93 = scmp.eq.s32.totalorder %s24, 1
      %p94 = por %p92, %p93
      %p95 = scmp.ne.s32.totalorder %s84, %s85
      %p96 = scmp.eq.s32.totalorder %s24, 0
      %p97 = por %p95, %p96
      %p98 = scmp.ne.s32.totalorder %s84, %s85
      %p99 = scmp.eq.s32.totalorder %s25, 1
      %p100 = por %p98, %p99
      %p102 = scmp.ne.s32.totalorder %s85, %s101
      %p103 = scmp.eq.s32.totalorder %s25, 0
      %p104 = por %p102, %p103
      %s106 = sadd.s32 %s105, 1
      %p109 = scmp.eq.s32.totalorder %s19, 1
      %p110 = scmp.ne.s32.totalorder %s105, %s107
      %p111 = scmp.eq.s32.totalorder %s19, 0
      %p112 = por %p110, %p111
      %p113 = scmp.ne.s32.totalorder %s105, %s107
      %p114 = scmp.eq.s32.totalorder %s24, 1
      %p115 = por %p113, %p114
      %p116 = scmp.ne.s32.totalorder %s107, %s108
      %p117 = scmp.eq.s32.totalorder %s24, 0
      %p118 = por %p116, %p117
      %p119 = scmp.ne.s32.totalorder %s107, %s108
      %p120 = scmp.eq.s32.totalorder %s25, 1
      %p121 = por %p119, %p120
      %p123 = scmp.ne.s32.totalorder %s108, %s122
      %p124 = scmp.eq.s32.totalorder %s25, 0
      %p125 = por %p123, %p124
      %s127 = sadd.s32 %s126, 1
      %p130 = scmp.eq.s32.totalorder %s19, 1
      %p131 = scmp.ne.s32.totalorder %s126, %s128
      %p132 = scmp.eq.s32.totalorder %s19, 0
      %p133 = por %p131, %p132
      %p134 = scmp.ne.s32.totalorder %s126, %s128
      %p135 = scmp.eq.s32.totalorder %s24, 1
      %p136 = por %p134, %p135
      %p137 = scmp.ne.s32.totalorder %s128, %s129
      %p138 = scmp.eq.s32.totalorder %s24, 0
      %p139 = por %p137, %p138
      %p140 = scmp.ne.s32.totalorder %s128, %s129
      %p141 = scmp.eq.s32.totalorder %s25, 1
      %p142 = por %p140, %p141
      %p144 = scmp.ne.s32.totalorder %s129, %s143
      %p145 = scmp.eq.s32.totalorder %s25, 0
      %p146 = por %p144, %p145
      %s148 = sadd.s32 %s147, 1
      %p151 = scmp.eq.s32.totalorder %s19, 1
      %p152 = scmp.ne.s32.totalorder %s147, %s149
      %p153 = scmp.eq.s32.totalorder %s19, 0
      %p154 = por %p152, %p153
      %p155 = scmp.ne.s32.totalorder %s147, %s149
      %p156 = scmp.eq.s32.totalorder %s24, 1
      %p157 = por %p155, %p156
      %p158 = scmp.ne.s32.totalorder %s149, %s150
      %p159 = scmp.eq.s32.totalorder %s24, 0
      %p160 = por %p158, %p159
      %p161 = scmp.ne.s32.totalorder %s149, %s150
      %p162 = scmp.eq.s32.totalorder %s25, 1
      %p163 = por %p161, %p162
      %p165 = scmp.ne.s32.totalorder %s150, %s164
      %p166 = scmp.eq.s32.totalorder %s25, 0
      %p167 = por %p165, %p166
      %s169 = sadd.s32 %s168, 1
      %p172 = scmp.eq.s32.totalorder %s19, 1
      %p173 = scmp.ne.s32.totalorder %s168, %s170
      %p174 = scmp.eq.s32.totalorder %s19, 0
      %p175 = por %p173, %p174
      %p176 = scmp.ne.s32.totalorder %s168, %s170
      %p177 = scmp.eq.s32.totalorder %s24, 1
      %p178 = por %p176, %p177
      %p179 = scmp.ne.s32.totalorder %s170, %s171
      %p180 = scmp.eq.s32.totalorder %s24, 0
      %p181 = por %p179, %p180
      %p182 = scmp.ne.s32.totalorder %s170, %s171
      %p183 = scmp.eq.s32.totalorder %s25, 1
      %p184 = por %p182, %p183
      %p186 = scmp.ne.s32.totalorder %s171, %s185
      %p187 = scmp.eq.s32.totalorder %s25, 0
      %p188 = por %p186, %p187
      %s190 = sadd.s32 %s189, 1
      %p193 = scmp.eq.s32.totalorder %s19, 1
      %p194 = scmp.ne.s32.totalorder %s189, %s191
      %p195 = scmp.eq.s32.totalorder %s19, 0
      %p196 = por %p194, %p195
      %p197 = scmp.ne.s32.totalorder %s189, %s191
      %p198 = scmp.eq.s32.totalorder %s24, 1
      %p199 = por %p197, %p198
      %p200 = scmp.ne.s32.totalorder %s191, %s192
      %p201 = scmp.eq.s32.totalorder %s24, 0
      %p202 = por %p200, %p201
      %p203 = scmp.ne.s32.totalorder %s191, %s192
      %p204 = scmp.eq.s32.totalorder %s25, 1
      %p205 = por %p203, %p204
      %p207 = scmp.ne.s32.totalorder %s192, %s206
      %p208 = scmp.eq.s32.totalorder %s25, 0
      %p209 = por %p207, %p208
      %s211 = sadd.s32 %s210, 1
      %p214 = scmp.eq.s32.totalorder %s19, 1
      %p215 = scmp.ne.s32.totalorder %s210, %s212
      %p216 = scmp.eq.s32.totalorder %s19, 0
      %p217 = por %p215, %p216
      %p218 = scmp.ne.s32.totalorder %s210, %s212
      %p219 = scmp.eq.s32.totalorder %s24, 1
      %p220 = por %p218, %p219
      %p221 = scmp.ne.s32.totalorder %s212, %s213
      %p222 = scmp.eq.s32.totalorder %s24, 0
      %p223 = por %p221, %p222
      %p224 = scmp.ne.s32.totalorder %s212, %s213
      %p225 = scmp.eq.s32.totalorder %s25, 1
      %p226 = por %p224, %p225
      %p228 = scmp.ne.s32.totalorder %s213, %s227
      %p229 = scmp.eq.s32.totalorder %s25, 0
      %p230 = por %p228, %p229
      %s232 = sadd.s32 %s231, 1
      %p235 = scmp.eq.s32.totalorder %s19, 1
      %p236 = scmp.ne.s32.totalorder %s231, %s233
      %p237 = scmp.eq.s32.totalorder %s19, 0
      %p238 = por %p236, %p237
      %p239 = scmp.ne.s32.totalorder %s231, %s233
      %p240 = scmp.eq.s32.totalorder %s24, 1
      %p241 = por %p239, %p240
      %p242 = scmp.ne.s32.totalorder %s233, %s234
      %p243 = scmp.eq.s32.totalorder %s24, 0
      %p244 = por %p242, %p243
      %p245 = scmp.ne.s32.totalorder %s233, %s234
      %p246 = scmp.eq.s32.totalorder %s25, 1
      %p247 = por %p245, %p246
      %p249 = scmp.ne.s32.totalorder %s234, %s248
      %p250 = scmp.eq.s32.totalorder %s25, 0
      %p251 = por %p249, %p250
      %s253 = sadd.s32 %s252, 1
      %p256 = scmp.eq.s32.totalorder %s19, 1
      %p257 = scmp.ne.s32.totalorder %s252, %s254
      %p258 = scmp.eq.s32.totalorder %s19, 0
      %p259 = por %p257, %p258
      %p260 = scmp.ne.s32.totalorder %s252, %s254
      %p261 = scmp.eq.s32.totalorder %s24, 1
      %p262 = por %p260, %p261
      %p263 = scmp.ne.s32.totalorder %s254, %s255
      %p264 = scmp.eq.s32.totalorder %s24, 0
      %p265 = por %p263, %p264
      %p266 = scmp.ne.s32.totalorder %s254, %s255
      %p267 = scmp.eq.s32.totalorder %s25, 1
      %p268 = por %p266, %p267
      %p270 = scmp.ne.s32.totalorder %s255, %s269
      %p271 = scmp.eq.s32.totalorder %s25, 0
      %p272 = por %p270, %p271
      %s273 = ssub.s32 %s19, %s26
      %p274 = scmp.eq.s32.totalorder %s273, 0
      %s276 = sadd.s32 %s275, 1
      %s277 = scalar_select %p274, %s275, %s276
      %p280 = pneg %p274
      %p281 = scmp.eq.s32.totalorder %s19, 1
      %p282 = por %p280, %p281
      %p283 = scmp.ne.s32.totalorder %s275, %s278
      %p284 = scmp.eq.s32.totalorder %s19, 0
      %p285 = por %p283, %p284
      %p286 = scmp.ne.s32.totalorder %s275, %s278
      %p287 = scmp.eq.s32.totalorder %s24, 1
      %p288 = por %p286, %p287
      %p289 = scmp.ne.s32.totalorder %s278, %s279
      %p290 = scmp.eq.s32.totalorder %s24, 0
      %p291 = por %p289, %p290
      %p292 = scmp.ne.s32.totalorder %s278, %s279
      %p293 = scmp.eq.s32.totalorder %s25, 1
      %p294 = por %p292, %p293
      %p296 = scmp.ne.s32.totalorder %s279, %s295
      %p297 = scmp.eq.s32.totalorder %s25, 0
      %p298 = por %p296, %p297
      %p299 = scmp.le.s32.totalorder 1, %s19
      %p300 = scmp.lt.s32.totalorder %s19, 3
      %p301 = pnand %p299, %p300
      %p302 = pneg %p301
      // Predicated region
      $region9: #{tpu_custom_call.1} parent=5 // pred_check
        _
      $region10: #{tpu_custom_call.1} parent=5 // pred_check_branch
        %304 = sbr.rel (%p301) target = $region12
      $region11: #{tpu_custom_call.1} parent=5 // pred_region
        %s305 = ssub.s32 %s19, 1
        // Predicated region
        $region13: #{tpu_custom_call.1} parent=11 // pred_check
          %p306 = pneg %p118
        $region14: #{tpu_custom_call.1} parent=11 // pred_check_branch
          %308 = sbr.rel (%p306) target = $region16
        $region15: #{tpu_custom_call.1} parent=11 // pred_region
          _
        $region16: #{tpu_custom_call.1} parent=11 // pred_fallthru
          _
        // Predicated region
        $region17: #{tpu_custom_call.1} parent=11 // pred_check
          %p309 = pneg %p139
        $region18: #{tpu_custom_call.1} parent=11 // pred_check_branch
          %311 = sbr.rel (%p309) target = $region20
        $region19: #{tpu_custom_call.1} parent=11 // pred_region
          _
        $region20: #{tpu_custom_call.1} parent=11 // pred_fallthru
          _
        // Predicated region
        $region21: #{tpu_custom_call.1} parent=11 // pred_check
          %p312 = pneg %p160
        $region22: #{tpu_custom_call.1} parent=11 // pred_check_branch
          %314 = sbr.rel (%p312) target = $region24
        $region23: #{tpu_custom_call.1} parent=11 // pred_region
          _
        $region24: #{tpu_custom_call.1} parent=11 // pred_fallthru
          _
        // Predicated region
        $region25: #{tpu_custom_call.1} parent=11 // pred_check
          %p315 = pneg %p181
        $region26: #{tpu_custom_call.1} parent=11 // pred_check_branch
          %317 = sbr.rel (%p315) target = $region28
        $region27: #{tpu_custom_call.1} parent=11 // pred_region
          _
        $region28: #{tpu_custom_call.1} parent=11 // pred_fallthru
          _
        // Predicated region
        $region29: #{tpu_custom_call.1} parent=11 // pred_check
          %p318 = pneg %p202
        $region30: #{tpu_custom_call.1} parent=11 // pred_check_branch
          %320 = sbr.rel (%p318) target = $region32
        $region31: #{tpu_custom_call.1} parent=11 // pred_region
          _
        $region32: #{tpu_custom_call.1} parent=11 // pred_fallthru
          _
        // Predicated region
        $region33: #{tpu_custom_call.1} parent=11 // pred_check
          %p321 = pneg %p223
        $region34: #{tpu_custom_call.1} parent=11 // pred_check_branch
          %323 = sbr.rel (%p321) target = $region36
        $region35: #{tpu_custom_call.1} parent=11 // pred_region
          _
        $region36: #{tpu_custom_call.1} parent=11 // pred_fallthru
          _
        // Predicated region
        $region37: #{tpu_custom_call.1} parent=11 // pred_check
          %p324 = pneg %p244
        $region38: #{tpu_custom_call.1} parent=11 // pred_check_branch
          %326 = sbr.rel (%p324) target = $region40
        $region39: #{tpu_custom_call.1} parent=11 // pred_region
          _
        $region40: #{tpu_custom_call.1} parent=11 // pred_fallthru
          _
        // Predicated region
        $region41: #{tpu_custom_call.1} parent=11 // pred_check
          %p327 = pneg %p265
        $region42: #{tpu_custom_call.1} parent=11 // pred_check_branch
          %329 = sbr.rel (%p327) target = $region44
        $region43: #{tpu_custom_call.1} parent=11 // pred_region
          _
        $region44: #{tpu_custom_call.1} parent=11 // pred_fallthru
          _
      $region12: #{tpu_custom_call.1} parent=5 // pred_fallthru
        _
      %p330 = scmp.lt.s32.totalorder %s19, 2
      // Predicated region
      $region45: #{tpu_custom_call.1} parent=5 // pred_check
        %p331 = pneg %p330
      $region46: #{tpu_custom_call.1} parent=5 // pred_check_branch
        %333 = sbr.rel (%p331) target = $region48
      $region47: #{tpu_custom_call.1} parent=5 // pred_region
        // Predicated region
        $region49: #{tpu_custom_call.1} parent=47 // pred_check
          %p334 = pneg %p39
        $region50: #{tpu_custom_call.1} parent=47 // pred_check_branch
          %336 = sbr.rel (%p334) target = $region52
        $region51: #{tpu_custom_call.1} parent=47 // pred_region
          %s337 = sand.u32 %s29, 1
          %s338 = sand.u32 %s29, 1
          %s339 = smul.addr %s338, 32
          %s340 = scalar_lea.vmem [#allocation5], %s339
          %s341 = smul.addr %s19, 4
          %s342 = scalar_lea.vmem %s0, %s341
          // Predicated region
          $region53: #{tpu_custom_call.1} parent=51 // pred_check
            _
          $region54: #{tpu_custom_call.1} parent=51 // pred_check_branch
            %344 = sbr.rel (0) target = $region56
          $region55: #{tpu_custom_call.1} parent=51 // pred_region
            // Predicated region
            $region57: #{tpu_custom_call.1} parent=55 // pred_check
              _
            $region58: #{tpu_custom_call.1} parent=55 // pred_check_branch
              %346 = sbr.rel target = $region60
            $region59: #{tpu_custom_call.1} parent=55 // pred_region
              // Predicated region
              $region72: #{tpu_custom_call.1} parent=59 // pred_check
                _
              $region73: #{tpu_custom_call.1} parent=59 // pred_check_branch
                %376 = sbr.rel (0) target = $region75
              $region74: #{tpu_custom_call.1} parent=59 // pred_region
                loop: start=0, step=1, limit=1
                $region76: #{tpu_custom_call.1} parent=74 // loop_pre_header
                  _
                $region77: #{tpu_custom_call.1} parent=74 // loop_header
                  %s378 = sphi 0, %s382
                  %p379 = scmp.ge.s32.totalorder %s378, 1
                  %s383 = sphi %s342, %s342
                  %s384 = sphi %s340, %s340
                $region78: #{tpu_custom_call.1} parent=74 // loop_header_branch
                  %381 = sbr.rel (%p379) target = $region82
                $region79: #{tpu_custom_call.1} parent=74 // loop_body
                  _
                $region80: #{tpu_custom_call.1} parent=74 // loop_footer
                  %s382 = sadd.s32 1, %s378
                $region81: #{tpu_custom_call.1} parent=74 // loop_footer_branch
                  %377 = sbr.rel target = $region77
                $region82: #{tpu_custom_call.1} parent=74 // loop_exit
                  _
                %s386 = ssub.s32 16, 1
                loop: start=0, step=1, limit=1
                $region83: #{tpu_custom_call.1} parent=74 // loop_pre_header
                  _
                $region84: #{tpu_custom_call.1} parent=74 // loop_header
                  %s388 = sphi 0, %s392
                  %p389 = scmp.ge.s32.totalorder %s388, 1
                  %s393 = sphi %s342, %s342
                  %s394 = sphi %s340, %s340
                $region85: #{tpu_custom_call.1} parent=74 // loop_header_branch
                  %391 = sbr.rel (%p389) target = $region89
                $region86: #{tpu_custom_call.1} parent=74 // loop_body
                  %v395 = vld [vmem:[%s393] sm:%s386]
                  %396 = vst [vmem:[%s394] sm:%s386] %v395
                  %v397 = vld [vmem:[%s393 + $0x8] sm:%s386]
                  %398 = vst [vmem:[%s394 + $0x4] sm:%s386] %v397
                  %v399 = vld [vmem:[%s393 + $0x10] sm:%s386]
                  %400 = vst [vmem:[%s394 + $0x8] sm:%s386] %v399
                  %v401 = vld [vmem:[%s393 + $0x18] sm:%s386]
                  %402 = vst [vmem:[%s394 + $0xc] sm:%s386] %v401
                  %v403 = vld [vmem:[%s393 + $0x20] sm:%s386]
                  %404 = vst [vmem:[%s394 + $0x10] sm:%s386] %v403
                  %v405 = vld [vmem:[%s393 + $0x28] sm:%s386]
                  %406 = vst [vmem:[%s394 + $0x14] sm:%s386] %v405
                  %v407 = vld [vmem:[%s393 + $0x30] sm:%s386]
                  %408 = vst [vmem:[%s394 + $0x18] sm:%s386] %v407
                  %v409 = vld [vmem:[%s393 + $0x38] sm:%s386]
                  %410 = vst [vmem:[%s394 + $0x1c] sm:%s386] %v409
                $region87: #{tpu_custom_call.1} parent=74 // loop_footer
                  %s392 = sadd.s32 1, %s388
                $region88: #{tpu_custom_call.1} parent=74 // loop_footer_branch
                  %387 = sbr.rel target = $region84
                $region89: #{tpu_custom_call.1} parent=74 // loop_exit
                  _
              $region75: #{tpu_custom_call.1} parent=59 // pred_fallthru
                _
            $region60: #{tpu_custom_call.1} parent=55 // pred_fallthru
              _
            // Predicated region
            $region61: #{tpu_custom_call.1} parent=55 // pred_check
              _
            $region62: #{tpu_custom_call.1} parent=55 // pred_check_branch
              %348 = sbr.rel (0) target = $region64
            $region63: #{tpu_custom_call.1} parent=55 // pred_region
              %s350 = ssub.s32 16, 1
              loop: start=0, step=1, limit=1
              $region65: #{tpu_custom_call.1} parent=63 // loop_pre_header
                _
              $region66: #{tpu_custom_call.1} parent=63 // loop_header
                %s352 = sphi 0, %s356
                %p353 = scmp.ge.s32.totalorder %s352, 1
                %s357 = sphi %s342, %s342
                %s358 = sphi %s340, %s340
              $region67: #{tpu_custom_call.1} parent=63 // loop_header_branch
                %355 = sbr.rel (%p353) target = $region71
              $region68: #{tpu_custom_call.1} parent=63 // loop_body
                %v359 = vld [vmem:[%s357] sm:%s350]
                %360 = vst [vmem:[%s358] sm:%s350] %v359
                %v361 = vld [vmem:[%s357 + $0x8] sm:%s350]
                %362 = vst [vmem:[%s358 + $0x4] sm:%s350] %v361
                %v363 = vld [vmem:[%s357 + $0x10] sm:%s350]
                %364 = vst [vmem:[%s358 + $0x8] sm:%s350] %v363
                %v365 = vld [vmem:[%s357 + $0x18] sm:%s350]
                %366 = vst [vmem:[%s358 + $0xc] sm:%s350] %v365
                %v367 = vld [vmem:[%s357 + $0x20] sm:%s350]
                %368 = vst [vmem:[%s358 + $0x10] sm:%s350] %v367
                %v369 = vld [vmem:[%s357 + $0x28] sm:%s350]
                %370 = vst [vmem:[%s358 + $0x14] sm:%s350] %v369
                %v371 = vld [vmem:[%s357 + $0x30] sm:%s350]
                %372 = vst [vmem:[%s358 + $0x18] sm:%s350] %v371
                %v373 = vld [vmem:[%s357 + $0x38] sm:%s350]
                %374 = vst [vmem:[%s358 + $0x1c] sm:%s350] %v373
              $region69: #{tpu_custom_call.1} parent=63 // loop_footer
                %s356 = sadd.s32 1, %s352
              $region70: #{tpu_custom_call.1} parent=63 // loop_footer_branch
                %351 = sbr.rel target = $region66
              $region71: #{tpu_custom_call.1} parent=63 // loop_exit
                _
            $region64: #{tpu_custom_call.1} parent=55 // pred_fallthru
              _
          $region56: #{tpu_custom_call.1} parent=51 // pred_fallthru
            _
          %411 = vnop
        $region52: #{tpu_custom_call.1} parent=47 // pred_fallthru
          _
        // Predicated region
        $region90: #{tpu_custom_call.1} parent=47 // pred_check
          %p412 = pneg %p65
        $region91: #{tpu_custom_call.1} parent=47 // pred_check_branch
          %414 = sbr.rel (%p412) target = $region93
        $region92: #{tpu_custom_call.1} parent=47 // pred_region
          %p415 = scmp.lt.s32.totalorder %s19, 1
          %s416 = scalar_select %p415, %s19, 1
          %s417 = smul.addr %s416, 4
          %s418 = scalar_lea.vmem %s1, %s417
        $region93: #{tpu_custom_call.1} parent=47 // pred_fallthru
          _
        // Predicated region
        $region94: #{tpu_custom_call.1} parent=47 // pred_check
          %p419 = pneg %p91
        $region95: #{tpu_custom_call.1} parent=47 // pred_check_branch
          %421 = sbr.rel (%p419) target = $region97
        $region96: #{tpu_custom_call.1} parent=47 // pred_region
          %p422 = scmp.lt.s32.totalorder %s19, 1
          %s423 = scalar_select %p422, %s19, 1
          %s424 = smul.addr %s423, 8
          %s425 = scalar_lea.vmem %s2, %s424
        $region97: #{tpu_custom_call.1} parent=47 // pred_fallthru
          _
      $region48: #{tpu_custom_call.1} parent=5 // pred_fallthru
        _
      %p426 = scmp.le.s32.totalorder 1, %s19
      %p427 = scmp.lt.s32.totalorder %s19, 3
      %p428 = pnand %p426, %p427
      %p429 = pneg %p428
      // Predicated region
      $region98: #{tpu_custom_call.1} parent=5 // pred_check
        _
      $region99: #{tpu_custom_call.1} parent=5 // pred_check_branch
        %431 = sbr.rel (%p428) target = $region101
      $region100: #{tpu_custom_call.1} parent=5 // pred_region
        %s432 = ssub.s32 %s19, 1
        %s433 = sand.u32 %s32, 1
        %s434 = sand.u32 %s32, 1
        %s435 = smul.addr %s434, 32
        %s436 = scalar_lea.vmem [#allocation5], %s435
        // Predicated region
        $region102: #{tpu_custom_call.1} parent=100 // pred_check
          %p437 = pneg %p45
        $region103: #{tpu_custom_call.1} parent=100 // pred_check_branch
          %439 = sbr.rel (%p437) target = $region105
        $region104: #{tpu_custom_call.1} parent=100 // pred_region
          _
        $region105: #{tpu_custom_call.1} parent=100 // pred_fallthru
          _
        %s440 = sand.u32 %s32, 1
        %s441 = sand.u32 %s32, 1
        %s442 = smul.addr %s441, 32
        %s443 = scalar_lea.vmem [#allocation5], %s442
        %p444 = pneg %p45
        %p445 = pneg %p42
        %p446 = scmp.lt.s32.totalorder %s24, 1
        %s447 = scalar_select %p446, %s24, 1
        %s448 = smul.addr %s447, 4
        %s449 = scalar_lea.vmem %s1, %s448
        %p450 = pneg %p71
        %p451 = pneg %p68
        %p452 = scmp.lt.s32.totalorder %s24, 1
        %s453 = scalar_select %p452, %s24, 1
        %s454 = smul.addr %s453, 8
        %s455 = scalar_lea.vmem %s2, %s454
        %p456 = pneg %p97
        %p457 = pneg %p94
        %p458 = pneg %p118
        %p459 = pneg %p115
        %p460 = pneg %p139
        %p461 = pneg %p136
        %p462 = pneg %p160
        %p463 = pneg %p157
        %p464 = pneg %p181
        %p465 = pneg %p178
        %p466 = pneg %p202
        %p467 = pneg %p199
        %p468 = pneg %p223
        %p469 = pneg %p220
        %p470 = pneg %p244
        %p471 = pneg %p241
        %p472 = pneg %p265
        %p473 = pneg %p262
        %p474 = pneg %p291
        %p475 = pneg %p288
        %p476 = scmp.lt.s32.totalorder %s24, 1
        %s477 = scalar_select %p476, %s24, 1
        %s478 = smul.addr %s477, 8
        %s479 = scalar_lea.vmem %s11, %s478
        %p480 = scmp.lt.s32.totalorder %s24, 1
        %s481 = scalar_select %p480, %s24, 1
        %s482 = smul.addr %s481, 4
        %s483 = scalar_lea.vmem %s1, %s482
        %p484 = scmp.lt.s32.totalorder %s24, 1
        %s485 = scalar_select %p484, %s24, 1
        %s486 = smul.addr %s485, 8
        %s487 = scalar_lea.vmem %s2, %s486
        %p488 = scmp.lt.s32.totalorder %s24, 1
        %s489 = scalar_select %p488, %s24, 1
        %s490 = smul.addr %s489, 8
        %s491 = scalar_lea.vmem %s11, %s490
        %v493 = vld [vmem:[%s483] sm:$0xf]
        %v494 = vld [vmem:[%s4] sm:$0xf]
        %v495 = vld [vmem:[%s4 + $0x4] sm:$0xf]
        %v496 = vld [vmem:[%s4 + $0x8] sm:$0xf]
        %v497 = vld [vmem:[%s7] sm:$0x1]
        %v499 = vlaneseq
        %v500 = vshrl.u32 %v499, 7
        %v501 = vsub.s32 0, %v500
        %v502 = vrot.slane %v497, %v501
        %v507 = vunpack.c.l.b16 %v494
        %v508 = vunpack.c.l.b16 %v495
        %v509 = vunpack.c.l.b16 %v496
        %v510 = vpack.c.b16 %v508, %v507
        %v511 = vpack.c.b16 %v509, %v509
        %vm513 = vcmask 195584
        %v515 = vsel %vm513, %v493, 0
        %vm517 = vcmask 1043456
        %v519 = vsel %vm517, %v511, 0
        %521 = vmatprep.subr.bf16.mxu0 0
        %522 = vmatpush1.bf16.msra.mxu0 0
        %523 = vmatprep.subr.bf16.mxu0 0
        %524 = vmatpush1.bf16.msra.mxu0 0
        %525 = vmatprep.subr.bf16.mxu0 0
        %526 = vmatpush1.bf16.msra.mxu0 0
        %527 = vmatprep.subr.bf16.mxu0 0
        %528 = vmatpush1.bf16.msra.mxu0 0
        %529 = vmatprep.subr.bf16.mxu0 0
        %530 = vmatpush1.bf16.msra.mxu0 0
        %531 = vmatprep.subr.bf16.mxu0 0
        %532 = vmatpush1.bf16.msra.mxu0 0
        %533 = vmatprep.subr.bf16.mxu0 0
        %534 = vmatpush1.bf16.msra.mxu0 %v519
        %535 = vmatprep.subr.bf16.mxu0 0
        %536 = vmatpush1.bf16.msra.mxu0 %v510
        %537 = vmatprep.subr.bf16.mxu0 0
        %538 = vmatpush2.bf16.msra.mxu0 0
        %539 = vmatprep.subr.bf16.mxu0 0
        %540 = vmatpush2.bf16.msra.mxu0 0
        %541 = vmatprep.subr.bf16.mxu0 0
        %542 = vmatpush2.bf16.msra.mxu0 0
        %543 = vmatprep.subr.bf16.mxu0 0
        %544 = vmatpush2.bf16.msra.mxu0 0
        %545 = vmatprep.subr.bf16.mxu0 0
        %546 = vmatpush2.bf16.msra.mxu0 0
        %547 = vmatprep.subr.bf16.mxu0 0
        %548 = vmatpush2.bf16.msra.mxu0 0
        %549 = vmatprep.subr.bf16.mxu0 0
        %550 = vmatpush2.bf16.msra.mxu0 0
        %551 = vmatprep.subr.bf16.mxu0 0
        %552 = vmatpush2.bf16.msra.mxu0 0
        %553 = vmatprep.mubr.bf16.mxu0 0
        %554 = vmatmul.mubr.bf16.gmra.mxu0 %v515
        %v555 = vpop.f32.mrf.mxu0
        %v556 = vadd.f32 %v502, %v555
        %v557 = vpop.f32.mrf.mxu0
        %v558 = vpop.f32.mrf.mxu0
        %v559 = vpop.f32.mrf.mxu0
        %560 = vdwg.mxu0
        %v561 = vld [vmem:[%s436] sm:$0xf]
        %v562 = vld [vmem:[%s436 + $0x4] sm:$0xf]
        %v563 = vld [vmem:[%s436 + $0x8] sm:$0xf]
        %v564 = vld [vmem:[%s436 + $0xc] sm:$0xf]
        %v565 = vld [vmem:[%s436 + $0x10] sm:$0xf]
        %v566 = vld [vmem:[%s436 + $0x14] sm:$0xf]
        %v567 = vld [vmem:[%s436 + $0x18] sm:$0xf]
        %v568 = vld [vmem:[%s436 + $0x1c] sm:$0xf]
        %v569 = vld [vmem:[%s3] sm:$0xf]
        %v578 = vunpack.c.l.b16 %v561
        %v579 = vunpack.c.l.b16 %v562
        %v580 = vunpack.c.l.b16 %v563
        %v581 = vunpack.c.l.b16 %v564
        %v582 = vunpack.c.l.b16 %v565
        %v583 = vunpack.c.l.b16 %v566
        %v584 = vunpack.c.l.b16 %v567
        %v585 = vunpack.c.l.b16 %v568
        %v586 = vpack.c.b16 %v579, %v578
        %v587 = vpack.c.b16 %v581, %v580
        %v588 = vpack.c.b16 %v583, %v582
        %v589 = vpack.c.b16 %v585, %v584
        %vm590 = vcmask 64512
        %v592 = vsel %vm590, %v586, 0
        %v595 = vsel %vm590, %v587, 0
        %v598 = vsel %vm590, %v588, 0
        %v601 = vsel %vm590, %v589, 0
        %v604 = vsel %vm517, %v569, 0
        %606 = vmatprep.subr.bf16.mxu0 0
        %607 = vmatpush1.bf16.msra.mxu0 0
        %608 = vmatprep.subr.bf16.mxu0 0
        %609 = vmatpush1.bf16.msra.mxu0 0
        %610 = vmatprep.subr.bf16.mxu0 0
        %611 = vmatpush1.bf16.msra.mxu0 0
        %612 = vmatprep.subr.bf16.mxu0 0
        %613 = vmatpush1.bf16.msra.mxu0 0
        %614 = vmatprep.subr.bf16.mxu0 0
        %615 = vmatpush1.bf16.msra.mxu0 0
        %616 = vmatprep.subr.bf16.mxu0 0
        %617 = vmatpush1.bf16.msra.mxu0 0
        %618 = vmatprep.subr.bf16.mxu0 0
        %619 = vmatpush1.bf16.msra.mxu0 0
        %620 = vmatprep.subr.bf16.mxu0 0
        %621 = vmatpush1.bf16.msra.mxu0 %v604
        %622 = vmatprep.subr.bf16.mxu0 0
        %623 = vmatpush2.bf16.msra.mxu0 0
        %624 = vmatprep.subr.bf16.mxu0 0
        %625 = vmatpush2.bf16.msra.mxu0 0
        %626 = vmatprep.subr.bf16.mxu0 0
        %627 = vmatpush2.bf16.msra.mxu0 0
        %628 = vmatprep.subr.bf16.mxu0 0
        %629 = vmatpush2.bf16.msra.mxu0 0
        %630 = vmatprep.subr.bf16.mxu0 0
        %631 = vmatpush2.bf16.msra.mxu0 0
        %632 = vmatprep.subr.bf16.mxu0 0
        %633 = vmatpush2.bf16.msra.mxu0 0
        %634 = vmatprep.subr.bf16.mxu0 0
        %635 = vmatpush2.bf16.msra.mxu0 0
        %636 = vmatprep.subr.bf16.mxu0 0
        %637 = vmatpush2.bf16.msra.mxu0 0
        %638 = vmatprep.mubr.bf16.mxu0 0
        %639 = vmatmul.mubr.bf16.gmra.mxu0 %v592
        %v640 = vpop.f32.mrf.mxu0
        %v641 = vadd.f32 0.0, %v640
        %v642 = vpop.f32.mrf.mxu0
        %v643 = vpop.f32.mrf.mxu0
        %v644 = vadd.f32 0.0, %v643
        %v645 = vpop.f32.mrf.mxu0
        %646 = vmatprep.mubr.bf16.mxu0 0
        %647 = vmatmul.mubr.bf16.gmra.mxu0 %v595
        %v648 = vpop.f32.mrf.mxu0
        %v649 = vadd.f32 0.0, %v648
        %v650 = vpop.f32.mrf.mxu0
        %v651 = vpop.f32.mrf.mxu0
        %v652 = vadd.f32 0.0, %v651
        %v653 = vpop.f32.mrf.mxu0
        %654 = vmatprep.mubr.bf16.mxu0 0
        %655 = vmatmul.mubr.bf16.gmra.mxu0 %v598
        %v656 = vpop.f32.mrf.mxu0
        %v657 = vadd.f32 0.0, %v656
        %v658 = vpop.f32.mrf.mxu0
        %v659 = vpop.f32.mrf.mxu0
        %v660 = vadd.f32 0.0, %v659
        %v661 = vpop.f32.mrf.mxu0
        %662 = vmatprep.mubr.bf16.mxu0 0
        %663 = vmatmul.mubr.bf16.gmra.mxu0 %v601
        %v664 = vpop.f32.mrf.mxu0
        %v665 = vadd.f32 0.0, %v664
        %v666 = vpop.f32.mrf.mxu0
        %v667 = vpop.f32.mrf.mxu0
        %v668 = vadd.f32 0.0, %v667
        %v669 = vpop.f32.mrf.mxu0
        %670 = vdwg.mxu0
        %v671 = vadd.f32 %v641, %v556
        %v672 = vadd.f32 %v644, %v556
        %v673 = vadd.f32 %v649, %v556
        %v674 = vadd.f32 %v652, %v556
        %v675 = vadd.f32 %v657, %v556
        %v676 = vadd.f32 %v660, %v556
        %v677 = vadd.f32 %v665, %v556
        %v678 = vadd.f32 %v668, %v556
        %v679 = vpack.c.bf16 %v671, %v671
        %v680 = vpack.c.bf16 %v672, %v672
        %v681 = vpack.c.bf16 %v673, %v673
        %v682 = vpack.c.bf16 %v674, %v674
        %v683 = vpack.c.bf16 %v675, %v675
        %v684 = vpack.c.bf16 %v676, %v676
        %v685 = vpack.c.bf16 %v677, %v677
        %v686 = vpack.c.bf16 %v678, %v678
        %687 = vst [vmem:[#allocation2] sm:$0xf] %v679
        %688 = vst [vmem:[#allocation2 + $0x4] sm:$0xf] %v680
        %689 = vst [vmem:[#allocation2 + $0x8] sm:$0xf] %v681
        %690 = vst [vmem:[#allocation2 + $0xc] sm:$0xf] %v682
        %691 = vst [vmem:[#allocation2 + $0x10] sm:$0xf] %v683
        %692 = vst [vmem:[#allocation2 + $0x14] sm:$0xf] %v684
        %693 = vst [vmem:[#allocation2 + $0x18] sm:$0xf] %v685
        %694 = vst [vmem:[#allocation2 + $0x1c] sm:$0xf] %v686
        %vm695 = vcmask 523264
        %696 = vst.msk [vmem:[#allocation3] sm:$0xff] %vm695, 0.0
        %v697 = vld [vmem:[%s5] sm:$0xf]
        %v698 = vld [vmem:[%s5 + $0x4] sm:$0xf]
        %v699 = vld [vmem:[%s5 + $0x8] sm:$0xf]
        %v700 = vld [vmem:[%s5 + $0xc] sm:$0xf]
        %v701 = vld [vmem:[%s6] sm:$0xf]
        %v702 = vld [vmem:[%s6 + $0x4] sm:$0xf]
        %v703 = vld [vmem:[%s6 + $0x8] sm:$0xf]
        %v704 = vld [vmem:[%s6 + $0xc] sm:$0xf]
        %v705 = vld [vmem:[%s6 + $0x10] sm:$0xf]
        %v706 = vld [vmem:[%s6 + $0x14] sm:$0xf]
        %v707 = vld [vmem:[%s6 + $0x18] sm:$0xf]
        %v708 = vld [vmem:[%s6 + $0x1c] sm:$0xf]
        %v709 = vld [vmem:[%s8] sm:$0x1]
        %v710 = vld [vmem:[%s487] sm:$0xff]
        %v711 = vld [vmem:[#allocation2] sm:$0xf]
        %v712 = vld [vmem:[#allocation3] sm:$0xff]
        %v713 = vpack.c.bf16 %v712, %v712
        %v718 = vunpack.c.l.b16 %v697
        %v719 = vunpack.c.l.b16 %v698
        %v720 = vunpack.c.l.b16 %v699
        %v721 = vunpack.c.l.b16 %v700
        %v722 = vpack.c.b16 %v719, %v718
        %v723 = vpack.c.b16 %v721, %v720
        %vm726 = vcmask 261120
        %v728 = vsel %vm726, %v713, 0
        %730 = vmatprep.subr.bf16.mxu0 0
        %731 = vmatpush1.bf16.msra.mxu0 0
        %732 = vmatprep.subr.bf16.mxu0 0
        %733 = vmatpush1.bf16.msra.mxu0 0
        %734 = vmatprep.subr.bf16.mxu0 0
        %735 = vmatpush1.bf16.msra.mxu0 0
        %736 = vmatprep.subr.bf16.mxu0 0
        %737 = vmatpush1.bf16.msra.mxu0 0
        %738 = vmatprep.subr.bf16.mxu0 0
        %739 = vmatpush1.bf16.msra.mxu0 0
        %740 = vmatprep.subr.bf16.mxu0 0
        %741 = vmatpush1.bf16.msra.mxu0 0
        %742 = vmatprep.subr.bf16.mxu0 0
        %743 = vmatpush1.bf16.msra.mxu0 %v723
        %744 = vmatprep.subr.bf16.mxu0 0
        %745 = vmatpush1.bf16.msra.mxu0 %v722
        %746 = vmatprep.subr.bf16.mxu0 0
        %747 = vmatpush2.bf16.msra.mxu0 0
        %748 = vmatprep.subr.bf16.mxu0 0
        %749 = vmatpush2.bf16.msra.mxu0 0
        %750 = vmatprep.subr.bf16.mxu0 0
        %751 = vmatpush2.bf16.msra.mxu0 0
        %752 = vmatprep.subr.bf16.mxu0 0
        %753 = vmatpush2.bf16.msra.mxu0 0
        %754 = vmatprep.subr.bf16.mxu0 0
        %755 = vmatpush2.bf16.msra.mxu0 0
        %756 = vmatprep.subr.bf16.mxu0 0
        %757 = vmatpush2.bf16.msra.mxu0 0
        %758 = vmatprep.subr.bf16.mxu0 0
        %759 = vmatpush2.bf16.msra.mxu0 0
        %760 = vmatprep.subr.bf16.mxu0 0
        %761 = vmatpush2.bf16.msra.mxu0 0
        %762 = vmatprep.mubr.bf16.mxu0 0
        %763 = vmatmul.mubr.bf16.gmra.mxu0 %v728
        %v764 = vpop.f32.mrf.mxu0
        %v765 = vadd.f32 0.0, %v764
        %v766 = vpop.f32.mrf.mxu0
        %v767 = vpop.f32.mrf.mxu0
        %v768 = vpop.f32.mrf.mxu0
        %769 = vdwg.mxu0
        %v770 = vunpack.c.l.bf16 %v711
        %v771 = vadd.f32 %v770, %v765
        %v772 = vxor.u32 %v771, 2147483648
        %v773 = vmul.f32 %v772, 1.442695
        %v774 = vpow.pop %v773
        %v775 = vadd.f32 %v774, 1.0
        %v776 = vrcp.pop %v775
        %v777 = vmul.f32 1.0, %v776
        %v778 = vtanh.pop %v771
        %v779 = vmul.f32 %v777, 0.0
        %781 = vrot.lane.b32.xlu0 %v778, 64
        %v782 = vpop.permute.xlu0 %781
        %v784 = vmul.f32 %v777, %v782
        %786 = vrot.lane.b32.xlu0 %v784, 32
        %v787 = vpop.permute.xlu0 %786
        %v789 = vadd.f32 %v779, %v787
        %v790 = vtanh.pop %v789
        %792 = vrot.lane.b32.xlu0 %v790, 64
        %v793 = vpop.permute.xlu0 %792
        %v795 = vmul.f32 %v777, %v793
        %797 = vrot.lane.b32.xlu0 %v795, 32
        %v798 = vpop.permute.xlu0 %797
        %800 = vst.msk [vmem:[#allocation3] sm:$0xff] %vm726, %v798
        %v801 = vld [vmem:[#allocation3] sm:$0xff]
        %v802 = vpack.c.bf16 %v801, %v801
        %v804 = vlaneseq
        %v805 = vshrl.u32 %v804, 7
        %v806 = vsub.s32 0, %v805
        %v807 = vrot.slane %v709, %v806
        %v817 = vunpack.c.l.b16 %v701
        %v818 = vunpack.c.l.b16 %v702
        %v819 = vunpack.c.l.b16 %v703
        %v820 = vunpack.c.l.b16 %v704
        %v821 = vunpack.c.l.b16 %v705
        %v822 = vunpack.c.l.b16 %v706
        %v823 = vunpack.c.l.b16 %v707
        %v824 = vunpack.c.l.b16 %v708
        %v825 = vpack.c.b16 %v818, %v817
        %v826 = vpack.c.b16 %v820, %v819
        %v827 = vpack.c.b16 %v822, %v821
        %v828 = vpack.c.b16 %v824, %v823
        %v834 = vsel %vm695, %v802, 0
        %836 = vmatprep.subr.bf16.mxu0 0
        %837 = vmatpush1.bf16.msra.mxu0 0
        %838 = vmatprep.subr.bf16.mxu0 0
        %839 = vmatpush1.bf16.msra.mxu0 0
        %840 = vmatprep.subr.bf16.mxu0 0
        %841 = vmatpush1.bf16.msra.mxu0 0
        %842 = vmatprep.subr.bf16.mxu0 0
        %843 = vmatpush1.bf16.msra.mxu0 0
        %844 = vmatprep.subr.bf16.mxu0 0
        %845 = vmatpush1.bf16.msra.mxu0 %v828
        %846 = vmatprep.subr.bf16.mxu0 0
        %847 = vmatpush1.bf16.msra.mxu0 %v827
        %848 = vmatprep.subr.bf16.mxu0 0
        %849 = vmatpush1.bf16.msra.mxu0 %v826
        %850 = vmatprep.subr.bf16.mxu0 0
        %851 = vmatpush1.bf16.msra.mxu0 %v825
        %852 = vmatprep.subr.bf16.mxu0 0
        %853 = vmatpush2.bf16.msra.mxu0 0
        %854 = vmatprep.subr.bf16.mxu0 0
        %855 = vmatpush2.bf16.msra.mxu0 0
        %856 = vmatprep.subr.bf16.mxu0 0
        %857 = vmatpush2.bf16.msra.mxu0 0
        %858 = vmatprep.subr.bf16.mxu0 0
        %859 = vmatpush2.bf16.msra.mxu0 0
        %860 = vmatprep.subr.bf16.mxu0 0
        %861 = vmatpush2.bf16.msra.mxu0 0
        %862 = vmatprep.subr.bf16.mxu0 0
        %863 = vmatpush2.bf16.msra.mxu0 0
        %864 = vmatprep.subr.bf16.mxu0 0
        %865 = vmatpush2.bf16.msra.mxu0 0
        %866 = vmatprep.subr.bf16.mxu0 0
        %867 = vmatpush2.bf16.msra.mxu0 0
        %868 = vmatprep.mubr.bf16.mxu0 0
        %869 = vmatmul.mubr.bf16.gmra.mxu0 %v834
        %v870 = vpop.f32.mrf.mxu0
        %v871 = vadd.f32 %v807, %v870
        %v872 = vpop.f32.mrf.mxu0
        %v873 = vpop.f32.mrf.mxu0
        %v874 = vpop.f32.mrf.mxu0
        %875 = vdwg.mxu0
        %v876 = vxor.u32 %v871, 2147483648
        %v877 = vmul.f32 %v876, 1.442695
        %v878 = vpow.pop %v877
        %v879 = vadd.f32 %v878, 1.0
        %v880 = vrcp.pop %v879
        %v881 = vmul.f32 1.0, %v880
        %v882 = vtanh.pop %v871
        %v883 = vmul.f32 %v881, 0.0
        %885 = vrot.lane.b32.xlu0 %v882, 64
        %v886 = vpop.permute.xlu0 %885
        %v888 = vmul.f32 %v881, %v886
        %890 = vrot.lane.b32.xlu0 %v888, 32
        %v891 = vpop.permute.xlu0 %890
        %v893 = vadd.f32 %v883, %v891
        %v894 = vtanh.pop %v893
        %896 = vrot.lane.b32.xlu0 %v894, 64
        %v897 = vpop.permute.xlu0 %896
        %v899 = vmul.f32 %v881, %v897
        %901 = vrot.lane.b32.xlu0 %v899, 64
        %v902 = vpop.permute.xlu0 %901
        %vm904 = vcmask 523520
        %905 = vst.msk [vmem:[#allocation3] sm:$0xff] %vm904, %v902
        %vm906 = vcmp.eq.s32.totalorder %v710, 1
        %v907 = vsel %vm906, 1, 0
        %908 = vset.pattern.permute.xlu0 0
        %909 = vperm.xlu0 %908, %v907
        %v910 = vpop.permute.xlu0 %909
        %vm911 = vcmp.eq.s32.totalorder %v910, 1
        %v912 = vsel %vm911, %v899, 0.0
        %s913 = scalar_lea.vmem [#allocation2], 4
        %v914 = vld [vmem:[%s913] sm:$0xf]
        %v915 = vld [vmem:[#allocation3] sm:$0xff]
        %v916 = vpack.c.bf16 %v915, %v915
        %v918 = vsel %vm726, %v916, 0
        %920 = vmatprep.subr.bf16.mxu0 0
        %921 = vmatpush1.bf16.msra.mxu0 0
        %922 = vmatprep.subr.bf16.mxu0 0
        %923 = vmatpush1.bf16.msra.mxu0 0
        %924 = vmatprep.subr.bf16.mxu0 0
        %925 = vmatpush1.bf16.msra.mxu0 0
        %926 = vmatprep.subr.bf16.mxu0 0
        %927 = vmatpush1.bf16.msra.mxu0 0
        %928 = vmatprep.subr.bf16.mxu0 0
        %929 = vmatpush1.bf16.msra.mxu0 0
        %930 = vmatprep.subr.bf16.mxu0 0
        %931 = vmatpush1.bf16.msra.mxu0 0
        %932 = vmatprep.subr.bf16.mxu0 0
        %933 = vmatpush1.bf16.msra.mxu0 %v723
        %934 = vmatprep.subr.bf16.mxu0 0
        %935 = vmatpush1.bf16.msra.mxu0 %v722
        %936 = vmatprep.subr.bf16.mxu0 0
        %937 = vmatpush2.bf16.msra.mxu0 0
        %938 = vmatprep.subr.bf16.mxu0 0
        %939 = vmatpush2.bf16.msra.mxu0 0
        %940 = vmatprep.subr.bf16.mxu0 0
        %941 = vmatpush2.bf16.msra.mxu0 0
        %942 = vmatprep.subr.bf16.mxu0 0
        %943 = vmatpush2.bf16.msra.mxu0 0
        %944 = vmatprep.subr.bf16.mxu0 0
        %945 = vmatpush2.bf16.msra.mxu0 0
        %946 = vmatprep.subr.bf16.mxu0 0
        %947 = vmatpush2.bf16.msra.mxu0 0
        %948 = vmatprep.subr.bf16.mxu0 0
        %949 = vmatpush2.bf16.msra.mxu0 0
        %950 = vmatprep.subr.bf16.mxu0 0
        %951 = vmatpush2.bf16.msra.mxu0 0
        %952 = vmatprep.mubr.bf16.mxu0 0
        %953 = vmatmul.mubr.bf16.gmra.mxu0 %v918
        %v954 = vpop.f32.mrf.mxu0
        %v955 = vadd.f32 0.0, %v954
        %v956 = vpop.f32.mrf.mxu0
        %v957 = vpop.f32.mrf.mxu0
        %v958 = vpop.f32.mrf.mxu0
        %959 = vdwg.mxu0
        %v960 = vunpack.c.l.bf16 %v914
        %v961 = vadd.f32 %v960, %v955
        %v962 = vxor.u32 %v961, 2147483648
        %v963 = vmul.f32 %v962, 1.442695
        %v964 = vpow.pop %v963
        %v965 = vadd.f32 %v964, 1.0
        %v966 = vrcp.pop %v965
        %v967 = vmul.f32 1.0, %v966
        %v968 = vtanh.pop %v961
        %v969 = vmul.f32 %v967, %v789
        %971 = vrot.lane.b32.xlu0 %v968, 64
        %v972 = vpop.permute.xlu0 %971
        %v974 = vmul.f32 %v967, %v972
        %976 = vrot.lane.b32.xlu0 %v974, 32
        %v977 = vpop.permute.xlu0 %976
        %v979 = vadd.f32 %v969, %v977
        %v980 = vtanh.pop %v979
        %982 = vrot.lane.b32.xlu0 %v980, 64
        %v983 = vpop.permute.xlu0 %982
        %v985 = vmul.f32 %v967, %v983
        %987 = vrot.lane.b32.xlu0 %v985, 32
        %v988 = vpop.permute.xlu0 %987
        %990 = vst.msk [vmem:[#allocation3] sm:$0xff] %vm726, %v988
        %v991 = vld [vmem:[#allocation3] sm:$0xff]
        %v992 = vpack.c.bf16 %v991, %v991
        %v994 = vsel %vm695, %v992, 0
        %996 = vmatprep.subr.bf16.mxu0 0
        %997 = vmatpush1.bf16.msra.mxu0 0
        %998 = vmatprep.subr.bf16.mxu0 0
        %999 = vmatpush1.bf16.msra.mxu0 0
        %1000 = vmatprep.subr.bf16.mxu0 0
        %1001 = vmatpush1.bf16.msra.mxu0 0
        %1002 = vmatprep.subr.bf16.mxu0 0
        %1003 = vmatpush1.bf16.msra.mxu0 0
        %1004 = vmatprep.subr.bf16.mxu0 0
        %1005 = vmatpush1.bf16.msra.mxu0 %v828
        %1006 = vmatprep.subr.bf16.mxu0 0
        %1007 = vmatpush1.bf16.msra.mxu0 %v827
        %1008 = vmatprep.subr.bf16.mxu0 0
        %1009 = vmatpush1.bf16.msra.mxu0 %v826
        %1010 = vmatprep.subr.bf16.mxu0 0
        %1011 = vmatpush1.bf16.msra.mxu0 %v825
        %1012 = vmatprep.subr.bf16.mxu0 0
        %1013 = vmatpush2.bf16.msra.mxu0 0
        %1014 = vmatprep.subr.bf16.mxu0 0
        %1015 = vmatpush2.bf16.msra.mxu0 0
        %1016 = vmatprep.subr.bf16.mxu0 0
        %1017 = vmatpush2.bf16.msra.mxu0 0
        %1018 = vmatprep.subr.bf16.mxu0 0
        %1019 = vmatpush2.bf16.msra.mxu0 0
        %1020 = vmatprep.subr.bf16.mxu0 0
        %1021 = vmatpush2.bf16.msra.mxu0 0
        %1022 = vmatprep.subr.bf16.mxu0 0
        %1023 = vmatpush2.bf16.msra.mxu0 0
        %1024 = vmatprep.subr.bf16.mxu0 0
        %1025 = vmatpush2.bf16.msra.mxu0 0
        %1026 = vmatprep.subr.bf16.mxu0 0
        %1027 = vmatpush2.bf16.msra.mxu0 0
        %1028 = vmatprep.mubr.bf16.mxu0 0
        %1029 = vmatmul.mubr.bf16.gmra.mxu0 %v994
        %v1030 = vpop.f32.mrf.mxu0
        %v1031 = vadd.f32 %v807, %v1030
        %v1032 = vpop.f32.mrf.mxu0
        %v1033 = vpop.f32.mrf.mxu0
        %v1034 = vpop.f32.mrf.mxu0
        %1035 = vdwg.mxu0
        %v1036 = vxor.u32 %v1031, 2147483648
        %v1037 = vmul.f32 %v1036, 1.442695
        %v1038 = vpow.pop %v1037
        %v1039 = vadd.f32 %v1038, 1.0
        %v1040 = vrcp.pop %v1039
        %v1041 = vmul.f32 1.0, %v1040
        %v1042 = vtanh.pop %v1031
        %v1043 = vmul.f32 %v1041, %v893
        %1045 = vrot.lane.b32.xlu0 %v1042, 64
        %v1046 = vpop.permute.xlu0 %1045
        %v1048 = vmul.f32 %v1041, %v1046
        %1050 = vrot.lane.b32.xlu0 %v1048, 32
        %v1051 = vpop.permute.xlu0 %1050
        %v1053 = vadd.f32 %v1043, %v1051
        %v1054 = vtanh.pop %v1053
        %1056 = vrot.lane.b32.xlu0 %v1054, 64
        %v1057 = vpop.permute.xlu0 %1056
        %v1059 = vmul.f32 %v1041, %v1057
        %1061 = vrot.lane.b32.xlu0 %v1059, 64
        %v1062 = vpop.permute.xlu0 %1061
        %1064 = vst.msk [vmem:[#allocation3] sm:$0xff] %vm904, %v1062
        %vm1065 = vcmp.eq.s32.totalorder %v710, 2
        %v1066 = vsel %vm1065, 1, 0
        %1067 = vset.pattern.permute.xlu0 0
        %1068 = vperm.xlu0 %1067, %v1066
        %v1069 = vpop.permute.xlu0 %1068
        %vm1070 = vcmp.eq.s32.totalorder %v1069, 1
        %v1071 = vsel %vm1070, %v1059, %v912
        %s1072 = scalar_lea.vmem [#allocation2], 8
        %v1073 = vld [vmem:[%s1072] sm:$0xf]
        %v1074 = vld [vmem:[#allocation3] sm:$0xff]
        %v1075 = vpack.c.bf16 %v1074, %v1074
        %v1077 = vsel %vm726, %v1075, 0
        %1079 = vmatprep.subr.bf16.mxu0 0
        %1080 = vmatpush1.bf16.msra.mxu0 0
        %1081 = vmatprep.subr.bf16.mxu0 0
        %1082 = vmatpush1.bf16.msra.mxu0 0
        %1083 = vmatprep.subr.bf16.mxu0 0
        %1084 = vmatpush1.bf16.msra.mxu0 0
        %1085 = vmatprep.subr.bf16.mxu0 0
        %1086 = vmatpush1.bf16.msra.mxu0 0
        %1087 = vmatprep.subr.bf16.mxu0 0
        %1088 = vmatpush1.bf16.msra.mxu0 0
        %1089 = vmatprep.subr.bf16.mxu0 0
        %1090 = vmatpush1.bf16.msra.mxu0 0
        %1091 = vmatprep.subr.bf16.mxu0 0
        %1092 = vmatpush1.bf16.msra.mxu0 %v723
        %1093 = vmatprep.subr.bf16.mxu0 0
        %1094 = vmatpush1.bf16.msra.mxu0 %v722
        %1095 = vmatprep.subr.bf16.mxu0 0
        %1096 = vmatpush2.bf16.msra.mxu0 0
        %1097 = vmatprep.subr.bf16.mxu0 0
        %1098 = vmatpush2.bf16.msra.mxu0 0
        %1099 = vmatprep.subr.bf16.mxu0 0
        %1100 = vmatpush2.bf16.msra.mxu0 0
        %1101 = vmatprep.subr.bf16.mxu0 0
        %1102 = vmatpush2.bf16.msra.mxu0 0
        %1103 = vmatprep.subr.bf16.mxu0 0
        %1104 = vmatpush2.bf16.msra.mxu0 0
        %1105 = vmatprep.subr.bf16.mxu0 0
        %1106 = vmatpush2.bf16.msra.mxu0 0
        %1107 = vmatprep.subr.bf16.mxu0 0
        %1108 = vmatpush2.bf16.msra.mxu0 0
        %1109 = vmatprep.subr.bf16.mxu0 0
        %1110 = vmatpush2.bf16.msra.mxu0 0
        %1111 = vmatprep.mubr.bf16.mxu0 0
        %1112 = vmatmul.mubr.bf16.gmra.mxu0 %v1077
        %v1113 = vpop.f32.mrf.mxu0
        %v1114 = vadd.f32 0.0, %v1113
        %v1115 = vpop.f32.mrf.mxu0
        %v1116 = vpop.f32.mrf.mxu0
        %v1117 = vpop.f32.mrf.mxu0
        %1118 = vdwg.mxu0
        %v1119 = vunpack.c.l.bf16 %v1073
        %v1120 = vadd.f32 %v1119, %v1114
        %v1121 = vxor.u32 %v1120, 2147483648
        %v1122 = vmul.f32 %v1121, 1.442695
        %v1123 = vpow.pop %v1122
        %v1124 = vadd.f32 %v1123, 1.0
        %v1125 = vrcp.pop %v1124
        %v1126 = vmul.f32 1.0, %v1125
        %v1127 = vtanh.pop %v1120
        %v1128 = vmul.f32 %v1126, %v979
        %1130 = vrot.lane.b32.xlu0 %v1127, 64
        %v1131 = vpop.permute.xlu0 %1130
        %v1133 = vmul.f32 %v1126, %v1131
        %1135 = vrot.lane.b32.xlu0 %v1133, 32
        %v1136 = vpop.permute.xlu0 %1135
        %v1138 = vadd.f32 %v1128, %v1136
        %v1139 = vtanh.pop %v1138
        %1141 = vrot.lane.b32.xlu0 %v1139, 64
        %v1142 = vpop.permute.xlu0 %1141
        %v1144 = vmul.f32 %v1126, %v1142
        %1146 = vrot.lane.b32.xlu0 %v1144, 32
        %v1147 = vpop.permute.xlu0 %1146
        %1149 = vst.msk [vmem:[#allocation3] sm:$0xff] %vm726, %v1147
        %v1150 = vld [vmem:[#allocation3] sm:$0xff]
        %v1151 = vpack.c.bf16 %v1150, %v1150
        %v1153 = vsel %vm695, %v1151, 0
        %1155 = vmatprep.subr.bf16.mxu0 0
        %1156 = vmatpush1.bf16.msra.mxu0 0
        %1157 = vmatprep.subr.bf16.mxu0 0
        %1158 = vmatpush1.bf16.msra.mxu0 0
        %1159 = vmatprep.subr.bf16.mxu0 0
        %1160 = vmatpush1.bf16.msra.mxu0 0
        %1161 = vmatprep.subr.bf16.mxu0 0
        %1162 = vmatpush1.bf16.msra.mxu0 0
        %1163 = vmatprep.subr.bf16.mxu0 0
        %1164 = vmatpush1.bf16.msra.mxu0 %v828
        %1165 = vmatprep.subr.bf16.mxu0 0
        %1166 = vmatpush1.bf16.msra.mxu0 %v827
        %1167 = vmatprep.subr.bf16.mxu0 0
        %1168 = vmatpush1.bf16.msra.mxu0 %v826
        %1169 = vmatprep.subr.bf16.mxu0 0
        %1170 = vmatpush1.bf16.msra.mxu0 %v825
        %1171 = vmatprep.subr.bf16.mxu0 0
        %1172 = vmatpush2.bf16.msra.mxu0 0
        %1173 = vmatprep.subr.bf16.mxu0 0
        %1174 = vmatpush2.bf16.msra.mxu0 0
        %1175 = vmatprep.subr.bf16.mxu0 0
        %1176 = vmatpush2.bf16.msra.mxu0 0
        %1177 = vmatprep.subr.bf16.mxu0 0
        %1178 = vmatpush2.bf16.msra.mxu0 0
        %1179 = vmatprep.subr.bf16.mxu0 0
        %1180 = vmatpush2.bf16.msra.mxu0 0
        %1181 = vmatprep.subr.bf16.mxu0 0
        %1182 = vmatpush2.bf16.msra.mxu0 0
        %1183 = vmatprep.subr.bf16.mxu0 0
        %1184 = vmatpush2.bf16.msra.mxu0 0
        %1185 = vmatprep.subr.bf16.mxu0 0
        %1186 = vmatpush2.bf16.msra.mxu0 0
        %1187 = vmatprep.mubr.bf16.mxu0 0
        %1188 = vmatmul.mubr.bf16.gmra.mxu0 %v1153
        %v1189 = vpop.f32.mrf.mxu0
        %v1190 = vadd.f32 %v807, %v1189
        %v1191 = vpop.f32.mrf.mxu0
        %v1192 = vpop.f32.mrf.mxu0
        %v1193 = vpop.f32.mrf.mxu0
        %1194 = vdwg.mxu0
        %v1195 = vxor.u32 %v1190, 2147483648
        %v1196 = vmul.f32 %v1195, 1.442695
        %v1197 = vpow.pop %v1196
        %v1198 = vadd.f32 %v1197, 1.0
        %v1199 = vrcp.pop %v1198
        %v1200 = vmul.f32 1.0, %v1199
        %v1201 = vtanh.pop %v1190
        %v1202 = vmul.f32 %v1200, %v1053
        %1204 = vrot.lane.b32.xlu0 %v1201, 64
        %v1205 = vpop.permute.xlu0 %1204
        %v1207 = vmul.f32 %v1200, %v1205
        %1209 = vrot.lane.b32.xlu0 %v1207, 32
        %v1210 = vpop.permute.xlu0 %1209
        %v1212 = vadd.f32 %v1202, %v1210
        %v1213 = vtanh.pop %v1212
        %1215 = vrot.lane.b32.xlu0 %v1213, 64
        %v1216 = vpop.permute.xlu0 %1215
        %v1218 = vmul.f32 %v1200, %v1216
        %1220 = vrot.lane.b32.xlu0 %v1218, 64
        %v1221 = vpop.permute.xlu0 %1220
        %1223 = vst.msk [vmem:[#allocation3] sm:$0xff] %vm904, %v1221
        %vm1224 = vcmp.eq.s32.totalorder %v710, 3
        %v1225 = vsel %vm1224, 1, 0
        %1226 = vset.pattern.permute.xlu0 0
        %1227 = vperm.xlu0 %1226, %v1225
        %v1228 = vpop.permute.xlu0 %1227
        %vm1229 = vcmp.eq.s32.totalorder %v1228, 1
        %v1230 = vsel %vm1229, %v1218, %v1071
        %s1231 = scalar_lea.vmem [#allocation2], 12
        %v1232 = vld [vmem:[%s1231] sm:$0xf]
        %v1233 = vld [vmem:[#allocation3] sm:$0xff]
        %v1234 = vpack.c.bf16 %v1233, %v1233
        %v1236 = vsel %vm726, %v1234, 0
        %1238 = vmatprep.subr.bf16.mxu0 0
        %1239 = vmatpush1.bf16.msra.mxu0 0
        %1240 = vmatprep.subr.bf16.mxu0 0
        %1241 = vmatpush1.bf16.msra.mxu0 0
        %1242 = vmatprep.subr.bf16.mxu0 0
        %1243 = vmatpush1.bf16.msra.mxu0 0
        %1244 = vmatprep.subr.bf16.mxu0 0
        %1245 = vmatpush1.bf16.msra.mxu0 0
        %1246 = vmatprep.subr.bf16.mxu0 0
        %1247 = vmatpush1.bf16.msra.mxu0 0
        %1248 = vmatprep.subr.bf16.mxu0 0
        %1249 = vmatpush1.bf16.msra.mxu0 0
        %1250 = vmatprep.subr.bf16.mxu0 0
        %1251 = vmatpush1.bf16.msra.mxu0 %v723
        %1252 = vmatprep.subr.bf16.mxu0 0
        %1253 = vmatpush1.bf16.msra.mxu0 %v722
        %1254 = vmatprep.subr.bf16.mxu0 0
        %1255 = vmatpush2.bf16.msra.mxu0 0
        %1256 = vmatprep.subr.bf16.mxu0 0
        %1257 = vmatpush2.bf16.msra.mxu0 0
        %1258 = vmatprep.subr.bf16.mxu0 0
        %1259 = vmatpush2.bf16.msra.mxu0 0
        %1260 = vmatprep.subr.bf16.mxu0 0
        %1261 = vmatpush2.bf16.msra.mxu0 0
        %1262 = vmatprep.subr.bf16.mxu0 0
        %1263 = vmatpush2.bf16.msra.mxu0 0
        %1264 = vmatprep.subr.bf16.mxu0 0
        %1265 = vmatpush2.bf16.msra.mxu0 0
        %1266 = vmatprep.subr.bf16.mxu0 0
        %1267 = vmatpush2.bf16.msra.mxu0 0
        %1268 = vmatprep.subr.bf16.mxu0 0
        %1269 = vmatpush2.bf16.msra.mxu0 0
        %1270 = vmatprep.mubr.bf16.mxu0 0
        %1271 = vmatmul.mubr.bf16.gmra.mxu0 %v1236
        %v1272 = vpop.f32.mrf.mxu0
        %v1273 = vadd.f32 0.0, %v1272
        %v1274 = vpop.f32.mrf.mxu0
        %v1275 = vpop.f32.mrf.mxu0
        %v1276 = vpop.f32.mrf.mxu0
        %1277 = vdwg.mxu0
        %v1278 = vunpack.c.l.bf16 %v1232
        %v1279 = vadd.f32 %v1278, %v1273
        %v1280 = vxor.u32 %v1279, 2147483648
        %v1281 = vmul.f32 %v1280, 1.442695
        %v1282 = vpow.pop %v1281
        %v1283 = vadd.f32 %v1282, 1.0
        %v1284 = vrcp.pop %v1283
        %v1285 = vmul.f32 1.0, %v1284
        %v1286 = vtanh.pop %v1279
        %v1287 = vmul.f32 %v1285, %v1138
        %1289 = vrot.lane.b32.xlu0 %v1286, 64
        %v1290 = vpop.permute.xlu0 %1289
        %v1292 = vmul.f32 %v1285, %v1290
        %1294 = vrot.lane.b32.xlu0 %v1292, 32
        %v1295 = vpop.permute.xlu0 %1294
        %v1297 = vadd.f32 %v1287, %v1295
        %v1298 = vtanh.pop %v1297
        %1300 = vrot.lane.b32.xlu0 %v1298, 64
        %v1301 = vpop.permute.xlu0 %1300
        %v1303 = vmul.f32 %v1285, %v1301
        %1305 = vrot.lane.b32.xlu0 %v1303, 32
        %v1306 = vpop.permute.xlu0 %1305
        %1308 = vst.msk [vmem:[#allocation3] sm:$0xff] %vm726, %v1306
        %v1309 = vld [vmem:[#allocation3] sm:$0xff]
        %v1310 = vpack.c.bf16 %v1309, %v1309
        %v1312 = vsel %vm695, %v1310, 0
        %1314 = vmatprep.subr.bf16.mxu0 0
        %1315 = vmatpush1.bf16.msra.mxu0 0
        %1316 = vmatprep.subr.bf16.mxu0 0
        %1317 = vmatpush1.bf16.msra.mxu0 0
        %1318 = vmatprep.subr.bf16.mxu0 0
        %1319 = vmatpush1.bf16.msra.mxu0 0
        %1320 = vmatprep.subr.bf16.mxu0 0
        %1321 = vmatpush1.bf16.msra.mxu0 0
        %1322 = vmatprep.subr.bf16.mxu0 0
        %1323 = vmatpush1.bf16.msra.mxu0 %v828
        %1324 = vmatprep.subr.bf16.mxu0 0
        %1325 = vmatpush1.bf16.msra.mxu0 %v827
        %1326 = vmatprep.subr.bf16.mxu0 0
        %1327 = vmatpush1.bf16.msra.mxu0 %v826
        %1328 = vmatprep.subr.bf16.mxu0 0
        %1329 = vmatpush1.bf16.msra.mxu0 %v825
        %1330 = vmatprep.subr.bf16.mxu0 0
        %1331 = vmatpush2.bf16.msra.mxu0 0
        %1332 = vmatprep.subr.bf16.mxu0 0
        %1333 = vmatpush2.bf16.msra.mxu0 0
        %1334 = vmatprep.subr.bf16.mxu0 0
        %1335 = vmatpush2.bf16.msra.mxu0 0
        %1336 = vmatprep.subr.bf16.mxu0 0
        %1337 = vmatpush2.bf16.msra.mxu0 0
        %1338 = vmatprep.subr.bf16.mxu0 0
        %1339 = vmatpush2.bf16.msra.mxu0 0
        %1340 = vmatprep.subr.bf16.mxu0 0
        %1341 = vmatpush2.bf16.msra.mxu0 0
        %1342 = vmatprep.subr.bf16.mxu0 0
        %1343 = vmatpush2.bf16.msra.mxu0 0
        %1344 = vmatprep.subr.bf16.mxu0 0
        %1345 = vmatpush2.bf16.msra.mxu0 0
        %1346 = vmatprep.mubr.bf16.mxu0 0
        %1347 = vmatmul.mubr.bf16.gmra.mxu0 %v1312
        %v1348 = vpop.f32.mrf.mxu0
        %v1349 = vadd.f32 %v807, %v1348
        %v1350 = vpop.f32.mrf.mxu0
        %v1351 = vpop.f32.mrf.mxu0
        %v1352 = vpop.f32.mrf.mxu0
        %1353 = vdwg.mxu0
        %v1354 = vxor.u32 %v1349, 2147483648
        %v1355 = vmul.f32 %v1354, 1.442695
        %v1356 = vpow.pop %v1355
        %v1357 = vadd.f32 %v1356, 1.0
        %v1358 = vrcp.pop %v1357
        %v1359 = vmul.f32 1.0, %v1358
        %v1360 = vtanh.pop %v1349
        %v1361 = vmul.f32 %v1359, %v1212
        %1363 = vrot.lane.b32.xlu0 %v1360, 64
        %v1364 = vpop.permute.xlu0 %1363
        %v1366 = vmul.f32 %v1359, %v1364
        %1368 = vrot.lane.b32.xlu0 %v1366, 32
        %v1369 = vpop.permute.xlu0 %1368
        %v1371 = vadd.f32 %v1361, %v1369
        %v1372 = vtanh.pop %v1371
        %1374 = vrot.lane.b32.xlu0 %v1372, 64
        %v1375 = vpop.permute.xlu0 %1374
        %v1377 = vmul.f32 %v1359, %v1375
        %1379 = vrot.lane.b32.xlu0 %v1377, 64
        %v1380 = vpop.permute.xlu0 %1379
        %1382 = vst.msk [vmem:[#allocation3] sm:$0xff] %vm904, %v1380
        %vm1383 = vcmp.eq.s32.totalorder %v710, 4
        %v1384 = vsel %vm1383, 1, 0
        %1385 = vset.pattern.permute.xlu0 0
        %1386 = vperm.xlu0 %1385, %v1384
        %v1387 = vpop.permute.xlu0 %1386
        %vm1388 = vcmp.eq.s32.totalorder %v1387, 1
        %v1389 = vsel %vm1388, %v1377, %v1230
        %s1390 = scalar_lea.vmem [#allocation2], 16
        %v1391 = vld [vmem:[%s1390] sm:$0xf]
        %v1392 = vld [vmem:[#allocation3] sm:$0xff]
        %v1393 = vpack.c.bf16 %v1392, %v1392
        %v1395 = vsel %vm726, %v1393, 0
        %1397 = vmatprep.subr.bf16.mxu0 0
        %1398 = vmatpush1.bf16.msra.mxu0 0
        %1399 = vmatprep.subr.bf16.mxu0 0
        %1400 = vmatpush1.bf16.msra.mxu0 0
        %1401 = vmatprep.subr.bf16.mxu0 0
        %1402 = vmatpush1.bf16.msra.mxu0 0
        %1403 = vmatprep.subr.bf16.mxu0 0
        %1404 = vmatpush1.bf16.msra.mxu0 0
        %1405 = vmatprep.subr.bf16.mxu0 0
        %1406 = vmatpush1.bf16.msra.mxu0 0
        %1407 = vmatprep.subr.bf16.mxu0 0
        %1408 = vmatpush1.bf16.msra.mxu0 0
        %1409 = vmatprep.subr.bf16.mxu0 0
        %1410 = vmatpush1.bf16.msra.mxu0 %v723
        %1411 = vmatprep.subr.bf16.mxu0 0
        %1412 = vmatpush1.bf16.msra.mxu0 %v722
        %1413 = vmatprep.subr.bf16.mxu0 0
        %1414 = vmatpush2.bf16.msra.mxu0 0
        %1415 = vmatprep.subr.bf16.mxu0 0
        %1416 = vmatpush2.bf16.msra.mxu0 0
        %1417 = vmatprep.subr.bf16.mxu0 0
        %1418 = vmatpush2.bf16.msra.mxu0 0
        %1419 = vmatprep.subr.bf16.mxu0 0
        %1420 = vmatpush2.bf16.msra.mxu0 0
        %1421 = vmatprep.subr.bf16.mxu0 0
        %1422 = vmatpush2.bf16.msra.mxu0 0
        %1423 = vmatprep.subr.bf16.mxu0 0
        %1424 = vmatpush2.bf16.msra.mxu0 0
        %1425 = vmatprep.subr.bf16.mxu0 0
        %1426 = vmatpush2.bf16.msra.mxu0 0
        %1427 = vmatprep.subr.bf16.mxu0 0
        %1428 = vmatpush2.bf16.msra.mxu0 0
        %1429 = vmatprep.mubr.bf16.mxu0 0
        %1430 = vmatmul.mubr.bf16.gmra.mxu0 %v1395
        %v1431 = vpop.f32.mrf.mxu0
        %v1432 = vadd.f32 0.0, %v1431
        %v1433 = vpop.f32.mrf.mxu0
        %v1434 = vpop.f32.mrf.mxu0
        %v1435 = vpop.f32.mrf.mxu0
        %1436 = vdwg.mxu0
        %v1437 = vunpack.c.l.bf16 %v1391
        %v1438 = vadd.f32 %v1437, %v1432
        %v1439 = vxor.u32 %v1438, 2147483648
        %v1440 = vmul.f32 %v1439, 1.442695
        %v1441 = vpow.pop %v1440
        %v1442 = vadd.f32 %v1441, 1.0
        %v1443 = vrcp.pop %v1442
        %v1444 = vmul.f32 1.0, %v1443
        %v1445 = vtanh.pop %v1438
        %v1446 = vmul.f32 %v1444, %v1297
        %1448 = vrot.lane.b32.xlu0 %v1445, 64
        %v1449 = vpop.permute.xlu0 %1448
        %v1451 = vmul.f32 %v1444, %v1449
        %1453 = vrot.lane.b32.xlu0 %v1451, 32
        %v1454 = vpop.permute.xlu0 %1453
        %v1456 = vadd.f32 %v1446, %v1454
        %v1457 = vtanh.pop %v1456
        %1459 = vrot.lane.b32.xlu0 %v1457, 64
        %v1460 = vpop.permute.xlu0 %1459
        %v1462 = vmul.f32 %v1444, %v1460
        %1464 = vrot.lane.b32.xlu0 %v1462, 32
        %v1465 = vpop.permute.xlu0 %1464
        %1467 = vst.msk [vmem:[#allocation3] sm:$0xff] %vm726, %v1465
        %v1468 = vld [vmem:[#allocation3] sm:$0xff]
        %v1469 = vpack.c.bf16 %v1468, %v1468
        %v1471 = vsel %vm695, %v1469, 0
        %1473 = vmatprep.subr.bf16.mxu0 0
        %1474 = vmatpush1.bf16.msra.mxu0 0
        %1475 = vmatprep.subr.bf16.mxu0 0
        %1476 = vmatpush1.bf16.msra.mxu0 0
        %1477 = vmatprep.subr.bf16.mxu0 0
        %1478 = vmatpush1.bf16.msra.mxu0 0
        %1479 = vmatprep.subr.bf16.mxu0 0
        %1480 = vmatpush1.bf16.msra.mxu0 0
        %1481 = vmatprep.subr.bf16.mxu0 0
        %1482 = vmatpush1.bf16.msra.mxu0 %v828
        %1483 = vmatprep.subr.bf16.mxu0 0
        %1484 = vmatpush1.bf16.msra.mxu0 %v827
        %1485 = vmatprep.subr.bf16.mxu0 0
        %1486 = vmatpush1.bf16.msra.mxu0 %v826
        %1487 = vmatprep.subr.bf16.mxu0 0
        %1488 = vmatpush1.bf16.msra.mxu0 %v825
        %1489 = vmatprep.subr.bf16.mxu0 0
        %1490 = vmatpush2.bf16.msra.mxu0 0
        %1491 = vmatprep.subr.bf16.mxu0 0
        %1492 = vmatpush2.bf16.msra.mxu0 0
        %1493 = vmatprep.subr.bf16.mxu0 0
        %1494 = vmatpush2.bf16.msra.mxu0 0
        %1495 = vmatprep.subr.bf16.mxu0 0
        %1496 = vmatpush2.bf16.msra.mxu0 0
        %1497 = vmatprep.subr.bf16.mxu0 0
        %1498 = vmatpush2.bf16.msra.mxu0 0
        %1499 = vmatprep.subr.bf16.mxu0 0
        %1500 = vmatpush2.bf16.msra.mxu0 0
        %1501 = vmatprep.subr.bf16.mxu0 0
        %1502 = vmatpush2.bf16.msra.mxu0 0
        %1503 = vmatprep.subr.bf16.mxu0 0
        %1504 = vmatpush2.bf16.msra.mxu0 0
        %1505 = vmatprep.mubr.bf16.mxu0 0
        %1506 = vmatmul.mubr.bf16.gmra.mxu0 %v1471
        %v1507 = vpop.f32.mrf.mxu0
        %v1508 = vadd.f32 %v807, %v1507
        %v1509 = vpop.f32.mrf.mxu0
        %v1510 = vpop.f32.mrf.mxu0
        %v1511 = vpop.f32.mrf.mxu0
        %1512 = vdwg.mxu0
        %v1513 = vxor.u32 %v1508, 2147483648
        %v1514 = vmul.f32 %v1513, 1.442695
        %v1515 = vpow.pop %v1514
        %v1516 = vadd.f32 %v1515, 1.0
        %v1517 = vrcp.pop %v1516
        %v1518 = vmul.f32 1.0, %v1517
        %v1519 = vtanh.pop %v1508
        %v1520 = vmul.f32 %v1518, %v1371
        %1522 = vrot.lane.b32.xlu0 %v1519, 64
        %v1523 = vpop.permute.xlu0 %1522
        %v1525 = vmul.f32 %v1518, %v1523
        %1527 = vrot.lane.b32.xlu0 %v1525, 32
        %v1528 = vpop.permute.xlu0 %1527
        %v1530 = vadd.f32 %v1520, %v1528
        %v1531 = vtanh.pop %v1530
        %1533 = vrot.lane.b32.xlu0 %v1531, 64
        %v1534 = vpop.permute.xlu0 %1533
        %v1536 = vmul.f32 %v1518, %v1534
        %1538 = vrot.lane.b32.xlu0 %v1536, 64
        %v1539 = vpop.permute.xlu0 %1538
        %1541 = vst.msk [vmem:[#allocation3] sm:$0xff] %vm904, %v1539
        %vm1542 = vcmp.eq.s32.totalorder %v710, 5
        %v1543 = vsel %vm1542, 1, 0
        %1544 = vset.pattern.permute.xlu0 0
        %1545 = vperm.xlu0 %1544, %v1543
        %v1546 = vpop.permute.xlu0 %1545
        %vm1547 = vcmp.eq.s32.totalorder %v1546, 1
        %v1548 = vsel %vm1547, %v1536, %v1389
        %s1549 = scalar_lea.vmem [#allocation2], 20
        %v1550 = vld [vmem:[%s1549] sm:$0xf]
        %v1551 = vld [vmem:[#allocation3] sm:$0xff]
        %v1552 = vpack.c.bf16 %v1551, %v1551
        %v1554 = vsel %vm726, %v1552, 0
        %1556 = vmatprep.subr.bf16.mxu0 0
        %1557 = vmatpush1.bf16.msra.mxu0 0
        %1558 = vmatprep.subr.bf16.mxu0 0
        %1559 = vmatpush1.bf16.msra.mxu0 0
        %1560 = vmatprep.subr.bf16.mxu0 0
        %1561 = vmatpush1.bf16.msra.mxu0 0
        %1562 = vmatprep.subr.bf16.mxu0 0
        %1563 = vmatpush1.bf16.msra.mxu0 0
        %1564 = vmatprep.subr.bf16.mxu0 0
        %1565 = vmatpush1.bf16.msra.mxu0 0
        %1566 = vmatprep.subr.bf16.mxu0 0
        %1567 = vmatpush1.bf16.msra.mxu0 0
        %1568 = vmatprep.subr.bf16.mxu0 0
        %1569 = vmatpush1.bf16.msra.mxu0 %v723
        %1570 = vmatprep.subr.bf16.mxu0 0
        %1571 = vmatpush1.bf16.msra.mxu0 %v722
        %1572 = vmatprep.subr.bf16.mxu0 0
        %1573 = vmatpush2.bf16.msra.mxu0 0
        %1574 = vmatprep.subr.bf16.mxu0 0
        %1575 = vmatpush2.bf16.msra.mxu0 0
        %1576 = vmatprep.subr.bf16.mxu0 0
        %1577 = vmatpush2.bf16.msra.mxu0 0
        %1578 = vmatprep.subr.bf16.mxu0 0
        %1579 = vmatpush2.bf16.msra.mxu0 0
        %1580 = vmatprep.subr.bf16.mxu0 0
        %1581 = vmatpush2.bf16.msra.mxu0 0
        %1582 = vmatprep.subr.bf16.mxu0 0
        %1583 = vmatpush2.bf16.msra.mxu0 0
        %1584 = vmatprep.subr.bf16.mxu0 0
        %1585 = vmatpush2.bf16.msra.mxu0 0
        %1586 = vmatprep.subr.bf16.mxu0 0
        %1587 = vmatpush2.bf16.msra.mxu0 0
        %1588 = vmatprep.mubr.bf16.mxu0 0
        %1589 = vmatmul.mubr.bf16.gmra.mxu0 %v1554
        %v1590 = vpop.f32.mrf.mxu0
        %v1591 = vadd.f32 0.0, %v1590
        %v1592 = vpop.f32.mrf.mxu0
        %v1593 = vpop.f32.mrf.mxu0
        %v1594 = vpop.f32.mrf.mxu0
        %1595 = vdwg.mxu0
        %v1596 = vunpack.c.l.bf16 %v1550
        %v1597 = vadd.f32 %v1596, %v1591
        %v1598 = vxor.u32 %v1597, 2147483648
        %v1599 = vmul.f32 %v1598, 1.442695
        %v1600 = vpow.pop %v1599
        %v1601 = vadd.f32 %v1600, 1.0
        %v1602 = vrcp.pop %v1601
        %v1603 = vmul.f32 1.0, %v1602
        %v1604 = vtanh.pop %v1597
        %v1605 = vmul.f32 %v1603, %v1456
        %1607 = vrot.lane.b32.xlu0 %v1604, 64
        %v1608 = vpop.permute.xlu0 %1607
        %v1610 = vmul.f32 %v1603, %v1608
        %1612 = vrot.lane.b32.xlu0 %v1610, 32
        %v1613 = vpop.permute.xlu0 %1612
        %v1615 = vadd.f32 %v1605, %v1613
        %v1616 = vtanh.pop %v1615
        %1618 = vrot.lane.b32.xlu0 %v1616, 64
        %v1619 = vpop.permute.xlu0 %1618
        %v1621 = vmul.f32 %v1603, %v1619
        %1623 = vrot.lane.b32.xlu0 %v1621, 32
        %v1624 = vpop.permute.xlu0 %1623
        %1626 = vst.msk [vmem:[#allocation3] sm:$0xff] %vm726, %v1624
        %v1627 = vld [vmem:[#allocation3] sm:$0xff]
        %v1628 = vpack.c.bf16 %v1627, %v1627
        %v1630 = vsel %vm695, %v1628, 0
        %1632 = vmatprep.subr.bf16.mxu0 0
        %1633 = vmatpush1.bf16.msra.mxu0 0
        %1634 = vmatprep.subr.bf16.mxu0 0
        %1635 = vmatpush1.bf16.msra.mxu0 0
        %1636 = vmatprep.subr.bf16.mxu0 0
        %1637 = vmatpush1.bf16.msra.mxu0 0
        %1638 = vmatprep.subr.bf16.mxu0 0
        %1639 = vmatpush1.bf16.msra.mxu0 0
        %1640 = vmatprep.subr.bf16.mxu0 0
        %1641 = vmatpush1.bf16.msra.mxu0 %v828
        %1642 = vmatprep.subr.bf16.mxu0 0
        %1643 = vmatpush1.bf16.msra.mxu0 %v827
        %1644 = vmatprep.subr.bf16.mxu0 0
        %1645 = vmatpush1.bf16.msra.mxu0 %v826
        %1646 = vmatprep.subr.bf16.mxu0 0
        %1647 = vmatpush1.bf16.msra.mxu0 %v825
        %1648 = vmatprep.subr.bf16.mxu0 0
        %1649 = vmatpush2.bf16.msra.mxu0 0
        %1650 = vmatprep.subr.bf16.mxu0 0
        %1651 = vmatpush2.bf16.msra.mxu0 0
        %1652 = vmatprep.subr.bf16.mxu0 0
        %1653 = vmatpush2.bf16.msra.mxu0 0
        %1654 = vmatprep.subr.bf16.mxu0 0
        %1655 = vmatpush2.bf16.msra.mxu0 0
        %1656 = vmatprep.subr.bf16.mxu0 0
        %1657 = vmatpush2.bf16.msra.mxu0 0
        %1658 = vmatprep.subr.bf16.mxu0 0
        %1659 = vmatpush2.bf16.msra.mxu0 0
        %1660 = vmatprep.subr.bf16.mxu0 0
        %1661 = vmatpush2.bf16.msra.mxu0 0
        %1662 = vmatprep.subr.bf16.mxu0 0
        %1663 = vmatpush2.bf16.msra.mxu0 0
        %1664 = vmatprep.mubr.bf16.mxu0 0
        %1665 = vmatmul.mubr.bf16.gmra.mxu0 %v1630
        %v1666 = vpop.f32.mrf.mxu0
        %v1667 = vadd.f32 %v807, %v1666
        %v1668 = vpop.f32.mrf.mxu0
        %v1669 = vpop.f32.mrf.mxu0
        %v1670 = vpop.f32.mrf.mxu0
        %1671 = vdwg.mxu0
        %v1672 = vxor.u32 %v1667, 2147483648
        %v1673 = vmul.f32 %v1672, 1.442695
        %v1674 = vpow.pop %v1673
        %v1675 = vadd.f32 %v1674, 1.0
        %v1676 = vrcp.pop %v1675
        %v1677 = vmul.f32 1.0, %v1676
        %v1678 = vtanh.pop %v1667
        %v1679 = vmul.f32 %v1677, %v1530
        %1681 = vrot.lane.b32.xlu0 %v1678, 64
        %v1682 = vpop.permute.xlu0 %1681
        %v1684 = vmul.f32 %v1677, %v1682
        %1686 = vrot.lane.b32.xlu0 %v1684, 32
        %v1687 = vpop.permute.xlu0 %1686
        %v1689 = vadd.f32 %v1679, %v1687
        %v1690 = vtanh.pop %v1689
        %1692 = vrot.lane.b32.xlu0 %v1690, 64
        %v1693 = vpop.permute.xlu0 %1692
        %v1695 = vmul.f32 %v1677, %v1693
        %1697 = vrot.lane.b32.xlu0 %v1695, 64
        %v1698 = vpop.permute.xlu0 %1697
        %1700 = vst.msk [vmem:[#allocation3] sm:$0xff] %vm904, %v1698
        %vm1701 = vcmp.eq.s32.totalorder %v710, 6
        %v1702 = vsel %vm1701, 1, 0
        %1703 = vset.pattern.permute.xlu0 0
        %1704 = vperm.xlu0 %1703, %v1702
        %v1705 = vpop.permute.xlu0 %1704
        %vm1706 = vcmp.eq.s32.totalorder %v1705, 1
        %v1707 = vsel %vm1706, %v1695, %v1548
        %s1708 = scalar_lea.vmem [#allocation2], 24
        %v1709 = vld [vmem:[%s1708] sm:$0xf]
        %v1710 = vld [vmem:[#allocation3] sm:$0xff]
        %v1711 = vpack.c.bf16 %v1710, %v1710
        %v1713 = vsel %vm726, %v1711, 0
        %1715 = vmatprep.subr.bf16.mxu0 0
        %1716 = vmatpush1.bf16.msra.mxu0 0
        %1717 = vmatprep.subr.bf16.mxu0 0
        %1718 = vmatpush1.bf16.msra.mxu0 0
        %1719 = vmatprep.subr.bf16.mxu0 0
        %1720 = vmatpush1.bf16.msra.mxu0 0
        %1721 = vmatprep.subr.bf16.mxu0 0
        %1722 = vmatpush1.bf16.msra.mxu0 0
        %1723 = vmatprep.subr.bf16.mxu0 0
        %1724 = vmatpush1.bf16.msra.mxu0 0
        %1725 = vmatprep.subr.bf16.mxu0 0
        %1726 = vmatpush1.bf16.msra.mxu0 0
        %1727 = vmatprep.subr.bf16.mxu0 0
        %1728 = vmatpush1.bf16.msra.mxu0 %v723
        %1729 = vmatprep.subr.bf16.mxu0 0
        %1730 = vmatpush1.bf16.msra.mxu0 %v722
        %1731 = vmatprep.subr.bf16.mxu0 0
        %1732 = vmatpush2.bf16.msra.mxu0 0
        %1733 = vmatprep.subr.bf16.mxu0 0
        %1734 = vmatpush2.bf16.msra.mxu0 0
        %1735 = vmatprep.subr.bf16.mxu0 0
        %1736 = vmatpush2.bf16.msra.mxu0 0
        %1737 = vmatprep.subr.bf16.mxu0 0
        %1738 = vmatpush2.bf16.msra.mxu0 0
        %1739 = vmatprep.subr.bf16.mxu0 0
        %1740 = vmatpush2.bf16.msra.mxu0 0
        %1741 = vmatprep.subr.bf16.mxu0 0
        %1742 = vmatpush2.bf16.msra.mxu0 0
        %1743 = vmatprep.subr.bf16.mxu0 0
        %1744 = vmatpush2.bf16.msra.mxu0 0
        %1745 = vmatprep.subr.bf16.mxu0 0
        %1746 = vmatpush2.bf16.msra.mxu0 0
        %1747 = vmatprep.mubr.bf16.mxu0 0
        %1748 = vmatmul.mubr.bf16.gmra.mxu0 %v1713
        %v1749 = vpop.f32.mrf.mxu0
        %v1750 = vadd.f32 0.0, %v1749
        %v1751 = vpop.f32.mrf.mxu0
        %v1752 = vpop.f32.mrf.mxu0
        %v1753 = vpop.f32.mrf.mxu0
        %1754 = vdwg.mxu0
        %v1755 = vunpack.c.l.bf16 %v1709
        %v1756 = vadd.f32 %v1755, %v1750
        %v1757 = vxor.u32 %v1756, 2147483648
        %v1758 = vmul.f32 %v1757, 1.442695
        %v1759 = vpow.pop %v1758
        %v1760 = vadd.f32 %v1759, 1.0
        %v1761 = vrcp.pop %v1760
        %v1762 = vmul.f32 1.0, %v1761
        %v1763 = vtanh.pop %v1756
        %v1764 = vmul.f32 %v1762, %v1615
        %1766 = vrot.lane.b32.xlu0 %v1763, 64
        %v1767 = vpop.permute.xlu0 %1766
        %v1769 = vmul.f32 %v1762, %v1767
        %1771 = vrot.lane.b32.xlu0 %v1769, 32
        %v1772 = vpop.permute.xlu0 %1771
        %v1774 = vadd.f32 %v1764, %v1772
        %v1775 = vtanh.pop %v1774
        %1777 = vrot.lane.b32.xlu0 %v1775, 64
        %v1778 = vpop.permute.xlu0 %1777
        %v1780 = vmul.f32 %v1762, %v1778
        %1782 = vrot.lane.b32.xlu0 %v1780, 32
        %v1783 = vpop.permute.xlu0 %1782
        %1785 = vst.msk [vmem:[#allocation3] sm:$0xff] %vm726, %v1783
        %v1786 = vld [vmem:[#allocation3] sm:$0xff]
        %v1787 = vpack.c.bf16 %v1786, %v1786
        %v1789 = vsel %vm695, %v1787, 0
        %1791 = vmatprep.subr.bf16.mxu0 0
        %1792 = vmatpush1.bf16.msra.mxu0 0
        %1793 = vmatprep.subr.bf16.mxu0 0
        %1794 = vmatpush1.bf16.msra.mxu0 0
        %1795 = vmatprep.subr.bf16.mxu0 0
        %1796 = vmatpush1.bf16.msra.mxu0 0
        %1797 = vmatprep.subr.bf16.mxu0 0
        %1798 = vmatpush1.bf16.msra.mxu0 0
        %1799 = vmatprep.subr.bf16.mxu0 0
        %1800 = vmatpush1.bf16.msra.mxu0 %v828
        %1801 = vmatprep.subr.bf16.mxu0 0
        %1802 = vmatpush1.bf16.msra.mxu0 %v827
        %1803 = vmatprep.subr.bf16.mxu0 0
        %1804 = vmatpush1.bf16.msra.mxu0 %v826
        %1805 = vmatprep.subr.bf16.mxu0 0
        %1806 = vmatpush1.bf16.msra.mxu0 %v825
        %1807 = vmatprep.subr.bf16.mxu0 0
        %1808 = vmatpush2.bf16.msra.mxu0 0
        %1809 = vmatprep.subr.bf16.mxu0 0
        %1810 = vmatpush2.bf16.msra.mxu0 0
        %1811 = vmatprep.subr.bf16.mxu0 0
        %1812 = vmatpush2.bf16.msra.mxu0 0
        %1813 = vmatprep.subr.bf16.mxu0 0
        %1814 = vmatpush2.bf16.msra.mxu0 0
        %1815 = vmatprep.subr.bf16.mxu0 0
        %1816 = vmatpush2.bf16.msra.mxu0 0
        %1817 = vmatprep.subr.bf16.mxu0 0
        %1818 = vmatpush2.bf16.msra.mxu0 0
        %1819 = vmatprep.subr.bf16.mxu0 0
        %1820 = vmatpush2.bf16.msra.mxu0 0
        %1821 = vmatprep.subr.bf16.mxu0 0
        %1822 = vmatpush2.bf16.msra.mxu0 0
        %1823 = vmatprep.mubr.bf16.mxu0 0
        %1824 = vmatmul.mubr.bf16.gmra.mxu0 %v1789
        %v1825 = vpop.f32.mrf.mxu0
        %v1826 = vadd.f32 %v807, %v1825
        %v1827 = vpop.f32.mrf.mxu0
        %v1828 = vpop.f32.mrf.mxu0
        %v1829 = vpop.f32.mrf.mxu0
        %1830 = vdwg.mxu0
        %v1831 = vxor.u32 %v1826, 2147483648
        %v1832 = vmul.f32 %v1831, 1.442695
        %v1833 = vpow.pop %v1832
        %v1834 = vadd.f32 %v1833, 1.0
        %v1835 = vrcp.pop %v1834
        %v1836 = vmul.f32 1.0, %v1835
        %v1837 = vtanh.pop %v1826
        %v1838 = vmul.f32 %v1836, %v1689
        %1840 = vrot.lane.b32.xlu0 %v1837, 64
        %v1841 = vpop.permute.xlu0 %1840
        %v1843 = vmul.f32 %v1836, %v1841
        %1845 = vrot.lane.b32.xlu0 %v1843, 32
        %v1846 = vpop.permute.xlu0 %1845
        %v1848 = vadd.f32 %v1838, %v1846
        %v1849 = vtanh.pop %v1848
        %1851 = vrot.lane.b32.xlu0 %v1849, 64
        %v1852 = vpop.permute.xlu0 %1851
        %v1854 = vmul.f32 %v1836, %v1852
        %1856 = vrot.lane.b32.xlu0 %v1854, 64
        %v1857 = vpop.permute.xlu0 %1856
        %1859 = vst.msk [vmem:[#allocation3] sm:$0xff] %vm904, %v1857
        %vm1860 = vcmp.eq.s32.totalorder %v710, 7
        %v1861 = vsel %vm1860, 1, 0
        %1862 = vset.pattern.permute.xlu0 0
        %1863 = vperm.xlu0 %1862, %v1861
        %v1864 = vpop.permute.xlu0 %1863
        %vm1865 = vcmp.eq.s32.totalorder %v1864, 1
        %v1866 = vsel %vm1865, %v1854, %v1707
        %s1867 = scalar_lea.vmem [#allocation2], 28
        %v1868 = vld [vmem:[%s1867] sm:$0xf]
        %v1869 = vld [vmem:[#allocation3] sm:$0xff]
        %v1870 = vpack.c.bf16 %v1869, %v1869
        %v1872 = vsel %vm726, %v1870, 0
        %1874 = vmatprep.subr.bf16.mxu0 0
        %1875 = vmatpush1.bf16.msra.mxu0 0
        %1876 = vmatprep.subr.bf16.mxu0 0
        %1877 = vmatpush1.bf16.msra.mxu0 0
        %1878 = vmatprep.subr.bf16.mxu0 0
        %1879 = vmatpush1.bf16.msra.mxu0 0
        %1880 = vmatprep.subr.bf16.mxu0 0
        %1881 = vmatpush1.bf16.msra.mxu0 0
        %1882 = vmatprep.subr.bf16.mxu0 0
        %1883 = vmatpush1.bf16.msra.mxu0 0
        %1884 = vmatprep.subr.bf16.mxu0 0
        %1885 = vmatpush1.bf16.msra.mxu0 0
        %1886 = vmatprep.subr.bf16.mxu0 0
        %1887 = vmatpush1.bf16.msra.mxu0 %v723
        %1888 = vmatprep.subr.bf16.mxu0 0
        %1889 = vmatpush1.bf16.msra.mxu0 %v722
        %1890 = vmatprep.subr.bf16.mxu0 0
        %1891 = vmatpush2.bf16.msra.mxu0 0
        %1892 = vmatprep.subr.bf16.mxu0 0
        %1893 = vmatpush2.bf16.msra.mxu0 0
        %1894 = vmatprep.subr.bf16.mxu0 0
        %1895 = vmatpush2.bf16.msra.mxu0 0
        %1896 = vmatprep.subr.bf16.mxu0 0
        %1897 = vmatpush2.bf16.msra.mxu0 0
        %1898 = vmatprep.subr.bf16.mxu0 0
        %1899 = vmatpush2.bf16.msra.mxu0 0
        %1900 = vmatprep.subr.bf16.mxu0 0
        %1901 = vmatpush2.bf16.msra.mxu0 0
        %1902 = vmatprep.subr.bf16.mxu0 0
        %1903 = vmatpush2.bf16.msra.mxu0 0
        %1904 = vmatprep.subr.bf16.mxu0 0
        %1905 = vmatpush2.bf16.msra.mxu0 0
        %1906 = vmatprep.mubr.bf16.mxu0 0
        %1907 = vmatmul.mubr.bf16.gmra.mxu0 %v1872
        %v1908 = vpop.f32.mrf.mxu0
        %v1909 = vadd.f32 0.0, %v1908
        %v1910 = vpop.f32.mrf.mxu0
        %v1911 = vpop.f32.mrf.mxu0
        %v1912 = vpop.f32.mrf.mxu0
        %1913 = vdwg.mxu0
        %v1914 = vunpack.c.l.bf16 %v1868
        %v1915 = vadd.f32 %v1914, %v1909
        %v1916 = vxor.u32 %v1915, 2147483648
        %v1917 = vmul.f32 %v1916, 1.442695
        %v1918 = vpow.pop %v1917
        %v1919 = vadd.f32 %v1918, 1.0
        %v1920 = vrcp.pop %v1919
        %v1921 = vmul.f32 1.0, %v1920
        %v1922 = vtanh.pop %v1915
        %v1923 = vmul.f32 %v1921, %v1774
        %1925 = vrot.lane.b32.xlu0 %v1922, 64
        %v1926 = vpop.permute.xlu0 %1925
        %v1928 = vmul.f32 %v1921, %v1926
        %1930 = vrot.lane.b32.xlu0 %v1928, 32
        %v1931 = vpop.permute.xlu0 %1930
        %v1933 = vadd.f32 %v1923, %v1931
        %v1934 = vtanh.pop %v1933
        %1936 = vrot.lane.b32.xlu0 %v1934, 64
        %v1937 = vpop.permute.xlu0 %1936
        %v1939 = vmul.f32 %v1921, %v1937
        %1941 = vrot.lane.b32.xlu0 %v1939, 32
        %v1942 = vpop.permute.xlu0 %1941
        %1944 = vst.msk [vmem:[#allocation3] sm:$0xff] %vm726, %v1942
        %v1945 = vld [vmem:[#allocation3] sm:$0xff]
        %v1946 = vpack.c.bf16 %v1945, %v1945
        %v1948 = vsel %vm695, %v1946, 0
        %1950 = vmatprep.subr.bf16.mxu0 0
        %1951 = vmatpush1.bf16.msra.mxu0 0
        %1952 = vmatprep.subr.bf16.mxu0 0
        %1953 = vmatpush1.bf16.msra.mxu0 0
        %1954 = vmatprep.subr.bf16.mxu0 0
        %1955 = vmatpush1.bf16.msra.mxu0 0
        %1956 = vmatprep.subr.bf16.mxu0 0
        %1957 = vmatpush1.bf16.msra.mxu0 0
        %1958 = vmatprep.subr.bf16.mxu0 0
        %1959 = vmatpush1.bf16.msra.mxu0 %v828
        %1960 = vmatprep.subr.bf16.mxu0 0
        %1961 = vmatpush1.bf16.msra.mxu0 %v827
        %1962 = vmatprep.subr.bf16.mxu0 0
        %1963 = vmatpush1.bf16.msra.mxu0 %v826
        %1964 = vmatprep.subr.bf16.mxu0 0
        %1965 = vmatpush1.bf16.msra.mxu0 %v825
        %1966 = vmatprep.subr.bf16.mxu0 0
        %1967 = vmatpush2.bf16.msra.mxu0 0
        %1968 = vmatprep.subr.bf16.mxu0 0
        %1969 = vmatpush2.bf16.msra.mxu0 0
        %1970 = vmatprep.subr.bf16.mxu0 0
        %1971 = vmatpush2.bf16.msra.mxu0 0
        %1972 = vmatprep.subr.bf16.mxu0 0
        %1973 = vmatpush2.bf16.msra.mxu0 0
        %1974 = vmatprep.subr.bf16.mxu0 0
        %1975 = vmatpush2.bf16.msra.mxu0 0
        %1976 = vmatprep.subr.bf16.mxu0 0
        %1977 = vmatpush2.bf16.msra.mxu0 0
        %1978 = vmatprep.subr.bf16.mxu0 0
        %1979 = vmatpush2.bf16.msra.mxu0 0
        %1980 = vmatprep.subr.bf16.mxu0 0
        %1981 = vmatpush2.bf16.msra.mxu0 0
        %1982 = vmatprep.mubr.bf16.mxu0 0
        %1983 = vmatmul.mubr.bf16.gmra.mxu0 %v1948
        %v1984 = vpop.f32.mrf.mxu0
        %v1985 = vadd.f32 %v807, %v1984
        %v1986 = vpop.f32.mrf.mxu0
        %v1987 = vpop.f32.mrf.mxu0
        %v1988 = vpop.f32.mrf.mxu0
        %1989 = vdwg.mxu0
        %v1990 = vxor.u32 %v1985, 2147483648
        %v1991 = vmul.f32 %v1990, 1.442695
        %v1992 = vpow.pop %v1991
        %v1993 = vadd.f32 %v1992, 1.0
        %v1994 = vrcp.pop %v1993
        %v1995 = vmul.f32 1.0, %v1994
        %v1996 = vtanh.pop %v1985
        %v1997 = vmul.f32 %v1995, %v1848
        %1999 = vrot.lane.b32.xlu0 %v1996, 64
        %v2000 = vpop.permute.xlu0 %1999
        %v2002 = vmul.f32 %v1995, %v2000
        %2004 = vrot.lane.b32.xlu0 %v2002, 32
        %v2005 = vpop.permute.xlu0 %2004
        %v2007 = vadd.f32 %v1997, %v2005
        %v2008 = vtanh.pop %v2007
        %2010 = vrot.lane.b32.xlu0 %v2008, 64
        %v2011 = vpop.permute.xlu0 %2010
        %v2013 = vmul.f32 %v1995, %v2011
        %2015 = vrot.lane.b32.xlu0 %v2013, 64
        %v2016 = vpop.permute.xlu0 %2015
        %2018 = vst.msk [vmem:[#allocation3] sm:$0xff] %vm904, %v2016
        %vm2019 = vcmp.eq.s32.totalorder %v710, 8
        %v2020 = vsel %vm2019, 1, 0
        %2021 = vset.pattern.permute.xlu0 0
        %2022 = vperm.xlu0 %2021, %v2020
        %v2023 = vpop.permute.xlu0 %2022
        %vm2024 = vcmp.eq.s32.totalorder %v2023, 1
        %v2025 = vsel %vm2024, %v2013, %v1866
        %v2026 = vld [vmem:[%s9] sm:$0x1]
        %v2028 = vlaneseq
        %v2029 = vshrl.u32 %v2028, 7
        %v2030 = vsub.s32 0, %v2029
        %v2031 = vrot.slane %v2026, %v2030
        %2032 = vrot.lane.b32.xlu0 %v2031, 96
        %v2033 = vpop.permute.xlu0 %2032
        %v2035 = vmul.f32 %v2025, %v2033
        %2037 = vrot.lane.b32.xlu0 %v2035, 32
        %v2038 = vpop.permute.xlu0 %2037
        %v2040 = vsel %vm726, %v2038, 0.0
        %2041 = vadd.xlane.f32.xlu0 %v2040
        %v2042 = vpop.xlane.xlu0 %2041
        %v2043 = vld [vmem:[#allocation4] sm:$0x1]
        %v2045 = vlaneseq
        %v2046 = vshrl.u32 %v2045, 7
        %v2047 = vsub.s32 0, %v2046
        %v2048 = vrot.slane %v2043, %v2047
        %v2050 = vadd.f32 %v2042, %v2048
        %vm2051 = vcmask 7168
        %2052 = vst.msk [vmem:[%s491] sm:$0xff] %vm2051, %v2050
        %p2053 = scmp.lt.s32.totalorder %s24, 1
        %s2054 = scalar_select %p2053, %s24, 1
        %s2055 = smul.addr %s2054, 8
        %s2056 = scalar_lea.vmem %s11, %s2055
        // Predicated region
        $region106: #{tpu_custom_call.1} parent=100 // pred_check
          %p2057 = pneg %p288
        $region107: #{tpu_custom_call.1} parent=100 // pred_check_branch
          %2059 = sbr.rel (%p2057) target = $region109
        $region108: #{tpu_custom_call.1} parent=100 // pred_region
          _
        $region109: #{tpu_custom_call.1} parent=100 // pred_fallthru
          _
      $region101: #{tpu_custom_call.1} parent=5 // pred_fallthru
        _
      %p2060 = scmp.le.s32.totalorder 2, %s19
      // Predicated region
      $region110: #{tpu_custom_call.1} parent=5 // pred_check
        %p2061 = pneg %p2060
      $region111: #{tpu_custom_call.1} parent=5 // pred_check_branch
        %2063 = sbr.rel (%p2061) target = $region113
      $region112: #{tpu_custom_call.1} parent=5 // pred_region
        %s2064 = ssub.s32 %s19, 2
        // Predicated region
        $region114: #{tpu_custom_call.1} parent=112 // pred_check
          %p2065 = pneg %p294
        $region115: #{tpu_custom_call.1} parent=112 // pred_check_branch
          %2067 = sbr.rel (%p2065) target = $region117
        $region116: #{tpu_custom_call.1} parent=112 // pred_region
          %p2068 = scmp.lt.s32.totalorder %s25, 1
          %s2069 = scalar_select %p2068, %s25, 1
          %s2070 = smul.addr %s2069, 8
          %s2071 = scalar_lea.vmem %s11, %s2070
        $region117: #{tpu_custom_call.1} parent=112 // pred_fallthru
          _
      $region113: #{tpu_custom_call.1} parent=5 // pred_fallthru
        _
    $region6: #{tpu_custom_call.1} parent=1 // loop_footer
      %s23 = sadd.s32 1, %s19
    $region7: #{tpu_custom_call.1} parent=1 // loop_footer_branch
      %18 = sbr.rel target = $region3
    $region8: #{tpu_custom_call.1} parent=1 // loop_exit
      _

</llo_original>
